<compile_context>
chip_gen: v7x
topology: tpu7x:2x2x1
jax: 0.10.0
libtpu: 0.0.40
codegen_flags: <defaults>
</compile_context>

<pallas_src>
import functools

import numpy as np
import jax
import jax.numpy as jnp
from jax.experimental import pallas as pl

# ------------------------- small hyperparameters -------------------------
FEATURE_SIZE = 32
HIDDEN_DIM = 32
PROJECTION_DIM = 16
NUM_PROTOTYPES = 64          # 2 * NUM_PROTOTYPES == 128 -> lane-dense q output
QUEUE_LENGTH = 8
EPSILON = 0.05
SINKHORN_ITERATIONS = 3


# ----------------------------- plain-JAX glue ------------------------------

def _im2col_nchw(x, kh=3, kw=3, pad=1):
    """[B, C, H, W] -> [B*H*W, kh*kw*C] patches (window-major, channel-minor)."""
    B, C, H, W = x.shape
    xp = jnp.pad(x, ((0, 0), (0, 0), (pad, pad), (pad, pad)))
    xp = jnp.transpose(xp, (0, 2, 3, 1))                       # [B, H+2p, W+2p, C]
    wins = [xp[:, i:i + H, j:j + W, :] for i in range(kh) for j in range(kw)]
    p = jnp.stack(wins, axis=3)                                # [B, H, W, kh*kw, C]
    return p.reshape(B * H * W, kh * kw * C)
    # TODO(synk): im2col could move in-kernel (9 shifted matmuls on the padded
    # image) to cut the ~9x HBM expansion; negligible at these tiny sizes.


# ------------------------- in-kernel building block -----------------------

def _encode(patches, n_imgs, hw, groups,
            wc, bc, w1, b1, gamma, beta, w2, b2):
    """Conv3x3 (im2col matmul) + ReLU + global-average-pool -> Linear ->
    BatchNorm (batch stats per group, affine) -> ReLU -> Linear -> L2 norm."""
    h = jnp.maximum(
        jnp.dot(patches, wc, preferred_element_type=jnp.float32) + bc, 0.0)
    # Global average pool: sublane reductions over static per-image row slices
    # (replaces the previous [N, N*HW] pool matmul).
    inv_hw = 1.0 / float(hw)
    feats = jnp.concatenate(
        [jnp.sum(h[i * hw:(i + 1) * hw, :], axis=0, keepdims=True)
         for i in range(n_imgs)], axis=0) * inv_hw                 # [n_imgs, F]
    g = jnp.dot(feats, w1, preferred_element_type=jnp.float32) + b1
    # BatchNorm1d batch statistics, computed per crop group (replaces the
    # previous selector/expand matmuls).
    per = n_imgs // groups
    parts = []
    for gi in range(groups):
        sub = g[gi * per:(gi + 1) * per, :]
        mean = jnp.mean(sub, axis=0, keepdims=True)
        diff = sub - mean
        var = jnp.mean(diff * diff, axis=0, keepdims=True)
        parts.append(diff * jax.lax.rsqrt(var + 1e-5))
    ghat = parts[0] if groups == 1 else jnp.concatenate(parts, axis=0)
    a = jnp.maximum(ghat * gamma + beta, 0.0)
    z = jnp.dot(a, w2, preferred_element_type=jnp.float32) + b2    # [n_imgs, P]
    ssq = jnp.sum(z * z, axis=1, keepdims=True)
    return z * jax.lax.rsqrt(jnp.maximum(ssq, 1e-24))              # L2 normalize


# ------------------------------- fused kernel -------------------------------

def _fused_kernel(*refs, epsilon, n_iters, with_queue, main_meta, crop_metas):
    n_groups = len(crop_metas)
    pos = 0
    main_patches = refs[pos]; pos += 1
    crop_patches = refs[pos:pos + n_groups]; pos += n_groups
    (wc_ref, bc_ref, w1_ref, b1_ref, gam_ref, bet_ref,
     w2_ref, b2_ref, wpn_ref) = refs[pos:pos + 9]; pos += 9
    if with_queue:
        queue_ref = refs[pos]; pos += 1                  # [2*Q, P] flattened queue
    zn_ref, c1_ref, q_ref = refs[pos:pos + 3]; pos += 3
    crop_out = refs[pos:pos + n_groups]

    wc, bc = wc_ref[...], bc_ref[...]
    w1, b1 = w1_ref[...], b1_ref[...]
    gamma, beta = gam_ref[...], bet_ref[...]
    w2, b2 = w2_ref[...], b2_ref[...]
    wpn = wpn_ref[...]                                   # prototypes, pre-normalized [P, K]
    K = wpn.shape[1]
    inv_eps = 1.0 / float(epsilon)

    # ---------------- main view: encoder -> prototype scores ----------------
    B1, hw1 = main_meta
    zn = _encode(main_patches[...], B1, hw1, 1,
                 wc, bc, w1, b1, gamma, beta, w2, b2)
    c = jnp.dot(zn, wpn, preferred_element_type=jnp.float32)       # [B1, K]
    zn_ref[...] = zn
    c1_ref[...] = c

    # --------- Sinkhorn: queue[0] and queue[1] batched over axis 0 ----------
    pc0 = jnp.exp(c * inv_eps)
    if with_queue:
        Q = queue_ref.shape[0] // 2
        bt = float(Q + B1)
        cq = jnp.dot(queue_ref[...], wpn,
                     preferred_element_type=jnp.float32)            # [2Q, K]
        pq_all = jnp.exp(cq * inv_eps)
        pq = jnp.stack([pq_all[:Q], pq_all[Q:]], axis=0)            # [2, Q,  K]
        pc = jnp.broadcast_to(pc0[None, :, :], (2, B1, K))          # [2, B1, K]
        tot = (jnp.sum(jnp.sum(pq, axis=2, keepdims=True), axis=1, keepdims=True)
               + jnp.sum(jnp.sum(pc, axis=2, keepdims=True), axis=1, keepdims=True))
        inv_tot = pl.reciprocal(tot, approx=True)                   # [2, 1, 1]
        pq = pq * inv_tot
        pc = pc * inv_tot
        for _ in range(n_iters):
            col = (jnp.sum(pq, axis=1, keepdims=True)
                   + jnp.sum(pc, axis=1, keepdims=True))            # [2, 1, K]
            inv_col = pl.reciprocal(col * float(K), approx=True)    # /colsum, /K folded
            pq = pq * inv_col
            pc = pc * inv_col
            pq = pq * pl.reciprocal(
                jnp.sum(pq, axis=2, keepdims=True) * bt, approx=True)
            pc = pc * pl.reciprocal(
                jnp.sum(pc, axis=2, keepdims=True) * bt, approx=True)
        # Lane-dense packed output: q1 in lanes [0, K), q2 in lanes [K, 2K).
        top = jnp.concatenate([pq[0], pq[1]], axis=1) * bt          # [Q,  2K]
        bot = jnp.concatenate([pc[0], pc[1]], axis=1) * bt          # [B1, 2K]
        q_ref[...] = jnp.concatenate([top, bot], axis=0)
    else:
        bv = float(B1)
        p = pc0 * pl.reciprocal(
            jnp.sum(jnp.sum(pc0, axis=1, keepdims=True), axis=0, keepdims=True),
            approx=True)
        for _ in range(n_iters):
            p = p * pl.reciprocal(jnp.sum(p, axis=0, keepdims=True) * float(K),
                                  approx=True)
            p = p * pl.reciprocal(jnp.sum(p, axis=1, keepdims=True) * bv,
                                  approx=True)
        p = p * bv
        q_ref[...] = jnp.concatenate([p, p], axis=1)                # q1 == q2

    # --------------- small crops (grouped by shape, BN per crop) -------------
    for gidx, (g_crops, b_crop, hw_c) in enumerate(crop_metas):
        zc = _encode(crop_patches[gidx][...], g_crops * b_crop, hw_c, g_crops,
                     wc, bc, w1, b1, gamma, beta, w2, b2)
        crop_out[gidx][...] = jnp.dot(zc, wpn,
                                      preferred_element_type=jnp.float32)


# --------------------------- pallas_call wrapper ----------------------------

def _fused_call(patches_main, crop_patches, weights, queue_flat, *,
                main_meta, crop_metas, epsilon, n_iters, with_queue):
    wc, bc, w1, b1, gamma, beta, w2, b2, wpn = weights
    B1 = main_meta[0]
    P = w2.shape[1]
    K = wpn.shape[1]
    rows = (queue_flat.shape[0] // 2 + B1) if with_queue else B1

    inputs = [patches_main, *crop_patches,
              wc, bc, w1, b1, gamma, beta, w2, b2, wpn]
    if with_queue:
        inputs.append(queue_flat)

    out_shape = [jax.ShapeDtypeStruct((B1, P), jnp.float32),         # z1 (L2-normalized)
                 jax.ShapeDtypeStruct((B1, K), jnp.float32),         # c1
                 jax.ShapeDtypeStruct((rows, 2 * K), jnp.float32)]   # [q1 | q2] packed
    for (g_crops, b_crop, _hw) in crop_metas:
        out_shape.append(jax.ShapeDtypeStruct((g_crops * b_crop, K), jnp.float32))

    kern = functools.partial(_fused_kernel, epsilon=epsilon, n_iters=n_iters,
                             with_queue=with_queue, main_meta=main_meta,
                             crop_metas=crop_metas)
    # All operands are tiny (<1 MiB total), so whole-array VMEM blocks are used.
    # TODO(synk): if batch/image size ever grows, tile the conv matmul over row
    # blocks and split main-view / crop work across a parallel grid axis so
    # v7x's two TensorCores are both used.
    return pl.pallas_call(kern, out_shape=tuple(out_shape))(*inputs)


# ------------------------------ forward pass --------------------------------

def _swav_forward(params, queue, x1, xc, *, bz, epsilon, n_iters, use_queue):
    wc, bc, w1, b1, gamma, beta, w2, b2, wp_t = params
    # Fold the prototype row-normalization into the weights once per forward
    # (a [P, K] elementwise op); the kernels then see pre-normalized prototypes.
    wpn = wp_t * jax.lax.rsqrt(
        jnp.maximum(jnp.sum(wp_t * wp_t, axis=0, keepdims=True), 1e-24))

    B1, _, H1, W1 = x1.shape
    patches1 = _im2col_nchw(x1)

    # Group same-shape crops: each group becomes one extra kernel input/output.
    by_shape = {}
    for idx, x in enumerate(xc):
        by_shape.setdefault(x.shape, []).append(idx)
    crop_patches, crop_metas = [], []
    for shape, idxs in by_shape.items():
        Bc, _, Hc, Wc = shape
        xb = xc[idxs[0]] if len(idxs) == 1 else jnp.concatenate(
            [xc[i] for i in idxs], axis=0)
        crop_patches.append(_im2col_nchw(xb))
        crop_metas.append((len(idxs), Bc, Hc * Wc))

    Qlen, P = queue.shape[1], queue.shape[2]
    queue_flat = queue.reshape(2 * Qlen, P)

    outs = _fused_call(
        patches1, crop_patches, (wc, bc, w1, b1, gamma, beta, w2, b2, wpn),
        queue_flat, main_meta=(B1, H1 * W1), crop_metas=tuple(crop_metas),
        epsilon=epsilon, n_iters=n_iters, with_queue=use_queue)

    zn1, c1, q_packed = outs[0], outs[1], outs[2]
    crop_scores = outs[3:]

    K = wp_t.shape[1]
    # The reference takes sinkhorn(cat(queue_proj, c))[:bz]; queue rows come
    # first in the packed assignment, so [:bz] matches the reference exactly.
    q1 = q_packed[:bz, :K]
    q2 = q_packed[:bz, K:]
    # z2 = encoder(x1) is bit-identical to z1 (deterministic pass) -> reuse.
    c2 = c1

    # Queue shift/insert (in-place buffer mutation in PyTorch), functionally.
    if use_queue:
        new_q0 = jnp.concatenate([zn1, queue[0, :Qlen - bz]], axis=0)
        new_q1 = jnp.concatenate([zn1, queue[1, :Qlen - bz]], axis=0)
        new_queue = jnp.stack([new_q0, new_q1], axis=0)
    else:
        new_queue = queue

    # Split grouped crop scores back into per-crop tensors (original order).
    c_c = [None] * len(xc)
    for gi, (shape, idxs) in enumerate(by_shape.items()):
        Bc = shape[0]
        for j, i in enumerate(idxs):
            c_c[i] = crop_scores[gi][j * Bc:(j + 1) * Bc]

    return (c1, c2, tuple(c_c)), (q1, q2), new_queue


# ------------------------------ SwAV wrapper ---------------------------------

class SwAVPallas:
    def __init__(self, in_channels=4, feature_size=FEATURE_SIZE,
                 projection_dim=PROJECTION_DIM, hidden_dim=HIDDEN_DIM,
                 epsilon=EPSILON, sinkhorn_iterations=SINKHORN_ITERATIONS,
                 num_prototypes=NUM_PROTOTYPES, queue_length=QUEUE_LENGTH,
                 use_the_queue=True, seed=0):
        self.epsilon = float(epsilon)
        self.sinkhorn_iterations = int(sinkhorn_iterations)
        self.use_the_queue = bool(use_the_queue)

        k = jax.random.PRNGKey(seed)
        k_conv, k_w1, k_b1, k_w2, k_b2, k_proto = jax.random.split(k, 6)
        # Backbone stand-in: Conv2d(in, F, 3, pad=1) + ReLU + global avg pool.
        fan_out = feature_size * 9
        conv_w = jax.random.normal(k_conv, (feature_size, in_channels, 3, 3),
                                   jnp.float32) * jnp.sqrt(2.0 / fan_out)
        conv_b = jnp.zeros((feature_size,), jnp.float32)
        # Projection head: Linear(F, H) -> BatchNorm1d(H) -> ReLU -> Linear(H, D)
        lim1 = 1.0 / float(np.sqrt(feature_size))
        w1 = jax.random.uniform(k_w1, (hidden_dim, feature_size), jnp.float32, -lim1, lim1)
        b1 = jax.random.uniform(k_b1, (hidden_dim,), jnp.float32, -lim1, lim1)
        lim2 = 1.0 / float(np.sqrt(hidden_dim))
        w2 = jax.random.uniform(k_w2, (projection_dim, hidden_dim), jnp.float32, -lim2, lim2)
        b2 = jax.random.uniform(k_b2, (projection_dim,), jnp.float32, -lim2, lim2)
        # Prototypes: Linear(D, K, bias=False)
        limp = 1.0 / float(np.sqrt(projection_dim))
        proto_w = jax.random.uniform(k_proto, (num_prototypes, projection_dim),
                                     jnp.float32, -limp, limp)

        # Pre-transposed / pre-reshaped weights (once at init; nothing on the
        # hot path needs an XLA transpose between kernels).
        self.params = (
            jnp.transpose(conv_w, (2, 3, 1, 0)).reshape(9 * in_channels, feature_size),
            conv_b.reshape(1, feature_size),
            w1.T, b1.reshape(1, hidden_dim),
            jnp.ones((1, hidden_dim), jnp.float32),    # BN gamma (default init 1)
            jnp.zeros((1, hidden_dim), jnp.float32),   # BN beta  (default init 0)
            w2.T, b2.reshape(1, projection_dim),
            proto_w.T,                                  # [P, K]
        )
        # Queue buffer (zeros, as in register_buffer).
        self.queue = jnp.zeros((2, queue_length, projection_dim), jnp.float32)

        self._forward = jax.jit(
            _swav_forward,
            static_argnames=("bz", "epsilon", "n_iters", "use_queue"))

    def __call__(self, x0, x1, xc):
        bz = int(x0.shape[0])   # x0 only contributes the batch size (as in the reference)
        (c1, c2, c_c), (q1, q2), new_queue = self._forward(
            self.params, self.queue, x1, tuple(xc),
            bz=bz, epsilon=self.epsilon, n_iters=self.sinkhorn_iterations,
            use_queue=self.use_the_queue)
        self.queue = new_queue
        return (c1, c2, list(c_c)), (q1, q2)


if __name__ == "__main__":
    key = jax.random.PRNGKey(0)
    k0, k1, kc1, kc2 = jax.random.split(key, 4)
    x0 = jax.random.normal(k0, (2, 4, 16, 16), jnp.float32)   # NCHW
    x1 = jax.random.normal(k1, (2, 4, 16, 16), jnp.float32)
    xc = [jax.random.normal(kc1, (2, 4, 8, 8), jnp.float32),  # 2 small crops
          jax.random.normal(kc2, (2, 4, 8, 8), jnp.float32)]

    model = SwAVPallas(in_channels=4)
    (c1, c2, c_c), (q1, q2) = model(x0, x1, xc)
    jax.block_until_ready((c1, c2, c_c, q1, q2, model.queue))

    assert c1.shape == (2, NUM_PROTOTYPES)
    assert c2.shape == (2, NUM_PROTOTYPES)
    assert all(cc.shape == (2, NUM_PROTOTYPES) for cc in c_c)
    assert q1.shape == (2, NUM_PROTOTYPES) and q2.shape == (2, NUM_PROTOTYPES)
    assert model.queue.shape == (2, QUEUE_LENGTH, PROJECTION_DIM)
    assert bool(jnp.all(jnp.isfinite(c1))) and bool(jnp.all(jnp.isfinite(q1)))
    assert bool(jnp.all(jnp.isfinite(q2))) and bool(jnp.all(jnp.isfinite(model.queue)))
    print("KERNEL_OK")
</pallas_src>

<mosaic_0001>
module attributes {stable_mosaic.version = 11 : i64} {
  func.func @_fused_kernel(%arg0: memref<512x36xf32, #tpu.memory_space<vmem>>, %arg1: memref<256x36xf32, #tpu.memory_space<vmem>>, %arg2: memref<36x32xf32, #tpu.memory_space<vmem>>, %arg3: memref<1x32xf32, #tpu.memory_space<vmem>>, %arg4: memref<32x32xf32, #tpu.memory_space<vmem>>, %arg5: memref<1x32xf32, #tpu.memory_space<vmem>>, %arg6: memref<1x32xf32, #tpu.memory_space<vmem>>, %arg7: memref<1x32xf32, #tpu.memory_space<vmem>>, %arg8: memref<32x16xf32, #tpu.memory_space<vmem>>, %arg9: memref<1x16xf32, #tpu.memory_space<vmem>>, %arg10: memref<16x64xf32, #tpu.memory_space<vmem>>, %arg11: memref<16x16xf32, #tpu.memory_space<vmem>>, %arg12: memref<2x16xf32, #tpu.memory_space<vmem>>, %arg13: memref<2x64xf32, #tpu.memory_space<vmem>>, %arg14: memref<10x128xf32, #tpu.memory_space<vmem>>, %arg15: memref<4x64xf32, #tpu.memory_space<vmem>>) attributes {dimension_semantics = [], scalar_prefetch = 0 : i64, scratch_operands = 0 : i64, tpu.core_type = #tpu.core_type<tc>} {
    %c0 = arith.constant 0 : index
    %c0_0 = arith.constant 0 : index
    %0 = vector.load %arg2[%c0, %c0_0] : memref<36x32xf32, #tpu.memory_space<vmem>>, vector<36x32xf32>
    %c0_1 = arith.constant 0 : index
    %c0_2 = arith.constant 0 : index
    %1 = vector.load %arg3[%c0_1, %c0_2] : memref<1x32xf32, #tpu.memory_space<vmem>>, vector<1x32xf32>
    %c0_3 = arith.constant 0 : index
    %c0_4 = arith.constant 0 : index
    %2 = vector.load %arg4[%c0_3, %c0_4] : memref<32x32xf32, #tpu.memory_space<vmem>>, vector<32x32xf32>
    %c0_5 = arith.constant 0 : index
    %c0_6 = arith.constant 0 : index
    %3 = vector.load %arg5[%c0_5, %c0_6] : memref<1x32xf32, #tpu.memory_space<vmem>>, vector<1x32xf32>
    %c0_7 = arith.constant 0 : index
    %c0_8 = arith.constant 0 : index
    %4 = vector.load %arg6[%c0_7, %c0_8] : memref<1x32xf32, #tpu.memory_space<vmem>>, vector<1x32xf32>
    %c0_9 = arith.constant 0 : index
    %c0_10 = arith.constant 0 : index
    %5 = vector.load %arg7[%c0_9, %c0_10] : memref<1x32xf32, #tpu.memory_space<vmem>>, vector<1x32xf32>
    %c0_11 = arith.constant 0 : index
    %c0_12 = arith.constant 0 : index
    %6 = vector.load %arg8[%c0_11, %c0_12] : memref<32x16xf32, #tpu.memory_space<vmem>>, vector<32x16xf32>
    %c0_13 = arith.constant 0 : index
    %c0_14 = arith.constant 0 : index
    %7 = vector.load %arg9[%c0_13, %c0_14] : memref<1x16xf32, #tpu.memory_space<vmem>>, vector<1x16xf32>
    %c0_15 = arith.constant 0 : index
    %c0_16 = arith.constant 0 : index
    %8 = vector.load %arg10[%c0_15, %c0_16] : memref<16x64xf32, #tpu.memory_space<vmem>>, vector<16x64xf32>
    %c0_17 = arith.constant 0 : index
    %c0_18 = arith.constant 0 : index
    %9 = vector.load %arg0[%c0_17, %c0_18] : memref<512x36xf32, #tpu.memory_space<vmem>>, vector<512x36xf32>
    %cst = arith.constant dense<0.000000e+00> : vector<512x32xf32>
    %10 = tpu.matmul %9, %0, %cst {dimension_numbers = #tpu.dot_dimension_numbers<[1], [0], [0], [1], [0, 0, 1, 1], [], []>} : vector<512x36xf32>, vector<36x32xf32>, vector<512x32xf32> -> vector<512x32xf32>
    %11 = vector.broadcast %1 : vector<1x32xf32> to vector<512x32xf32>
    %12 = arith.addf %10, %11 : vector<512x32xf32>
    %cst_19 = arith.constant 0.000000e+00 : f32
    %13 = vector.broadcast %cst_19 : f32 to vector<512x32xf32>
    %14 = arith.maximumf %12, %13 : vector<512x32xf32>
    %15 = vector.extract_strided_slice %14 {offsets = [0, 0], sizes = [256, 32], strides = [1, 1]} : vector<512x32xf32> to vector<256x32xf32>
    %cst_20 = arith.constant dense<0.000000e+00> : vector<32xf32>
    %16 = vector.multi_reduction <add>, %15, %cst_20 [0] : vector<256x32xf32> to vector<32xf32>
    %17 = vector.shape_cast %16 : vector<32xf32> to vector<1x32xf32>
    %18 = vector.extract_strided_slice %14 {offsets = [256, 0], sizes = [256, 32], strides = [1, 1]} : vector<512x32xf32> to vector<256x32xf32>
    %cst_21 = arith.constant dense<0.000000e+00> : vector<32xf32>
    %19 = vector.multi_reduction <add>, %18, %cst_21 [0] : vector<256x32xf32> to vector<32xf32>
    %20 = vector.shape_cast %19 : vector<32xf32> to vector<1x32xf32>
    %21 = tpu.concatenate %17, %20 in 0 : vector<1x32xf32>, vector<1x32xf32> -> vector<2x32xf32>
    %cst_22 = arith.constant 3.906250e-03 : f32
    %22 = vector.broadcast %cst_22 : f32 to vector<2x32xf32>
    %23 = arith.mulf %21, %22 : vector<2x32xf32>
    %cst_23 = arith.constant dense<0.000000e+00> : vector<2x32xf32>
    %24 = tpu.matmul %23, %2, %cst_23 {dimension_numbers = #tpu.dot_dimension_numbers<[1], [0], [0], [1], [0, 0, 1, 1], [], []>} : vector<2x32xf32>, vector<32x32xf32>, vector<2x32xf32> -> vector<2x32xf32>
    %25 = vector.broadcast %3 : vector<1x32xf32> to vector<2x32xf32>
    %26 = arith.addf %24, %25 : vector<2x32xf32>
    %cst_24 = arith.constant dense<0.000000e+00> : vector<32xf32>
    %27 = vector.multi_reduction <add>, %26, %cst_24 [0] : vector<2x32xf32> to vector<32xf32>
    %28 = vector.shape_cast %27 : vector<32xf32> to vector<1x32xf32>
    %cst_25 = arith.constant 2.000000e+00 : f32
    %29 = vector.broadcast %cst_25 : f32 to vector<1x32xf32>
    %30 = arith.divf %28, %29 : vector<1x32xf32>
    %31 = vector.broadcast %30 : vector<1x32xf32> to vector<2x32xf32>
    %32 = arith.subf %26, %31 : vector<2x32xf32>
    %33 = arith.mulf %32, %32 : vector<2x32xf32>
    %cst_26 = arith.constant dense<0.000000e+00> : vector<32xf32>
    %34 = vector.multi_reduction <add>, %33, %cst_26 [0] : vector<2x32xf32> to vector<32xf32>
    %35 = vector.shape_cast %34 : vector<32xf32> to vector<1x32xf32>
    %cst_27 = arith.constant 2.000000e+00 : f32
    %36 = vector.broadcast %cst_27 : f32 to vector<1x32xf32>
    %37 = arith.divf %35, %36 : vector<1x32xf32>
    %cst_28 = arith.constant 9.99999974E-6 : f32
    %38 = vector.broadcast %cst_28 : f32 to vector<1x32xf32>
    %39 = arith.addf %37, %38 : vector<1x32xf32>
    %40 = math.rsqrt %39 : vector<1x32xf32>
    %41 = vector.broadcast %40 : vector<1x32xf32> to vector<2x32xf32>
    %42 = arith.mulf %32, %41 : vector<2x32xf32>
    %43 = vector.broadcast %4 : vector<1x32xf32> to vector<2x32xf32>
    %44 = arith.mulf %42, %43 : vector<2x32xf32>
    %45 = vector.broadcast %5 : vector<1x32xf32> to vector<2x32xf32>
    %46 = arith.addf %44, %45 : vector<2x32xf32>
    %cst_29 = arith.constant 0.000000e+00 : f32
    %47 = vector.broadcast %cst_29 : f32 to vector<2x32xf32>
    %48 = arith.maximumf %46, %47 : vector<2x32xf32>
    %cst_30 = arith.constant dense<0.000000e+00> : vector<2x16xf32>
    %49 = tpu.matmul %48, %6, %cst_30 {dimension_numbers = #tpu.dot_dimension_numbers<[1], [0], [0], [1], [0, 0, 1, 1], [], []>} : vector<2x32xf32>, vector<32x16xf32>, vector<2x16xf32> -> vector<2x16xf32>
    %50 = vector.broadcast %7 : vector<1x16xf32> to vector<2x16xf32>
    %51 = arith.addf %49, %50 : vector<2x16xf32>
    %52 = arith.mulf %51, %51 : vector<2x16xf32>
    %cst_31 = arith.constant dense<0.000000e+00> : vector<2xf32>
    %53 = vector.multi_reduction <add>, %52, %cst_31 [1] : vector<2x16xf32> to vector<2xf32>
    %54 = vector.shape_cast %53 : vector<2xf32> to vector<2x1xf32>
    %cst_32 = arith.constant 1.000000e-24 : f32
    %55 = vector.broadcast %cst_32 : f32 to vector<2x1xf32>
    %56 = arith.maximumf %54, %55 : vector<2x1xf32>
    %57 = math.rsqrt %56 : vector<2x1xf32>
    %58 = vector.broadcast %57 : vector<2x1xf32> to vector<2x16xf32>
    %59 = arith.mulf %51, %58 : vector<2x16xf32>
    %cst_33 = arith.constant dense<0.000000e+00> : vector<2x64xf32>
    %60 = tpu.matmul %59, %8, %cst_33 {dimension_numbers = #tpu.dot_dimension_numbers<[1], [0], [0], [1], [0, 0, 1, 1], [], []>} : vector<2x16xf32>, vector<16x64xf32>, vector<2x64xf32> -> vector<2x64xf32>
    %c0_34 = arith.constant 0 : index
    %c0_35 = arith.constant 0 : index
    %61 = vector.load %arg12[%c0_34, %c0_35] : memref<2x16xf32, #tpu.memory_space<vmem>>, vector<2x16xf32>
    tpu.vector_store %arg12[%c0_34, %c0_35], %59 {strides = array<i32>} : memref<2x16xf32, #tpu.memory_space<vmem>>, vector<2x16xf32>,
    %c0_36 = arith.constant 0 : index
    %c0_37 = arith.constant 0 : index
    %62 = vector.load %arg13[%c0_36, %c0_37] : memref<2x64xf32, #tpu.memory_space<vmem>>, vector<2x64xf32>
    tpu.vector_store %arg13[%c0_36, %c0_37], %60 {strides = array<i32>} : memref<2x64xf32, #tpu.memory_space<vmem>>, vector<2x64xf32>,
    %cst_38 = arith.constant 2.000000e+01 : f32
    %63 = vector.broadcast %cst_38 : f32 to vector<2x64xf32>
    %64 = arith.mulf %60, %63 : vector<2x64xf32>
    %65 = math.exp %64 : vector<2x64xf32>
    %c0_39 = arith.constant 0 : index
    %c0_40 = arith.constant 0 : index
    %66 = vector.load %arg11[%c0_39, %c0_40] : memref<16x16xf32, #tpu.memory_space<vmem>>, vector<16x16xf32>
    %cst_41 = arith.constant dense<0.000000e+00> : vector<16x64xf32>
    %67 = tpu.matmul %66, %8, %cst_41 {dimension_numbers = #tpu.dot_dimension_numbers<[1], [0], [0], [1], [0, 0, 1, 1], [], []>} : vector<16x16xf32>, vector<16x64xf32>, vector<16x64xf32> -> vector<16x64xf32>
    %cst_42 = arith.constant 2.000000e+01 : f32
    %68 = vector.broadcast %cst_42 : f32 to vector<16x64xf32>
    %69 = arith.mulf %67, %68 : vector<16x64xf32>
    %70 = math.exp %69 : vector<16x64xf32>
    %71 = vector.extract_strided_slice %70 {offsets = [0, 0], sizes = [8, 64], strides = [1, 1]} : vector<16x64xf32> to vector<8x64xf32>
    %72 = vector.extract_strided_slice %70 {offsets = [8, 0], sizes = [8, 64], strides = [1, 1]} : vector<16x64xf32> to vector<8x64xf32>
    %73 = vector.shape_cast %71 : vector<8x64xf32> to vector<1x8x64xf32>
    %74 = vector.shape_cast %72 : vector<8x64xf32> to vector<1x8x64xf32>
    %75 = tpu.concatenate %73, %74 in 0 : vector<1x8x64xf32>, vector<1x8x64xf32> -> vector<2x8x64xf32>
    %76 = vector.shape_cast %65 : vector<2x64xf32> to vector<1x2x64xf32>
    %77 = vector.shape_cast %76 : vector<1x2x64xf32> to vector<1x2x64xf32>
    %78 = vector.broadcast %77 : vector<1x2x64xf32> to vector<2x2x64xf32>
    %cst_43 = arith.constant dense<0.000000e+00> : vector<2x8xf32>
    %79 = vector.multi_reduction <add>, %75, %cst_43 [2] : vector<2x8x64xf32> to vector<2x8xf32>
    %80 = vector.shape_cast %79 : vector<2x8xf32> to vector<2x8x1xf32>
    %cst_44 = arith.constant dense<0.000000e+00> : vector<2x1xf32>
    %81 = vector.multi_reduction <add>, %80, %cst_44 [1] : vector<2x8x1xf32> to vector<2x1xf32>
    %82 = vector.shape_cast %81 : vector<2x1xf32> to vector<2x1x1xf32>
    %cst_45 = arith.constant dense<0.000000e+00> : vector<2x2xf32>
    %83 = vector.multi_reduction <add>, %78, %cst_45 [2] : vector<2x2x64xf32> to vector<2x2xf32>
    %84 = vector.shape_cast %83 : vector<2x2xf32> to vector<2x2x1xf32>
    %cst_46 = arith.constant dense<0.000000e+00> : vector<2x1xf32>
    %85 = vector.multi_reduction <add>, %84, %cst_46 [1] : vector<2x2x1xf32> to vector<2x1xf32>
    %86 = vector.shape_cast %85 : vector<2x1xf32> to vector<2x1x1xf32>
    %87 = arith.addf %82, %86 : vector<2x1x1xf32>
    %88 = tpu.reciprocal %87 {approx = true} : vector<2x1x1xf32> -> vector<2x1x1xf32>
    %89 = vector.broadcast %88 : vector<2x1x1xf32> to vector<2x8x64xf32>
    %90 = arith.mulf %75, %89 : vector<2x8x64xf32>
    %91 = vector.broadcast %88 : vector<2x1x1xf32> to vector<2x2x64xf32>
    %92 = arith.mulf %78, %91 : vector<2x2x64xf32>
    %cst_47 = arith.constant dense<0.000000e+00> : vector<2x64xf32>
    %93 = vector.multi_reduction <add>, %90, %cst_47 [1] : vector<2x8x64xf32> to vector<2x64xf32>
    %94 = vector.shape_cast %93 : vector<2x64xf32> to vector<2x1x64xf32>
    %cst_48 = arith.constant dense<0.000000e+00> : vector<2x64xf32>
    %95 = vector.multi_reduction <add>, %92, %cst_48 [1] : vector<2x2x64xf32> to vector<2x64xf32>
    %96 = vector.shape_cast %95 : vector<2x64xf32> to vector<2x1x64xf32>
    %97 = arith.addf %94, %96 : vector<2x1x64xf32>
    %cst_49 = arith.constant 6.400000e+01 : f32
    %98 = vector.broadcast %cst_49 : f32 to vector<2x1x64xf32>
    %99 = arith.mulf %97, %98 : vector<2x1x64xf32>
    %100 = tpu.reciprocal %99 {approx = true} : vector<2x1x64xf32> -> vector<2x1x64xf32>
    %101 = vector.broadcast %100 : vector<2x1x64xf32> to vector<2x8x64xf32>
    %102 = arith.mulf %90, %101 : vector<2x8x64xf32>
    %103 = vector.broadcast %100 : vector<2x1x64xf32> to vector<2x2x64xf32>
    %104 = arith.mulf %92, %103 : vector<2x2x64xf32>
    %cst_50 = arith.constant dense<0.000000e+00> : vector<2x8xf32>
    %105 = vector.multi_reduction <add>, %102, %cst_50 [2] : vector<2x8x64xf32> to vector<2x8xf32>
    %106 = vector.shape_cast %105 : vector<2x8xf32> to vector<2x8x1xf32>
    %cst_51 = arith.constant 1.000000e+01 : f32
    %107 = vector.broadcast %cst_51 : f32 to vector<2x8x1xf32>
    %108 = arith.mulf %106, %107 : vector<2x8x1xf32>
    %109 = tpu.reciprocal %108 {approx = true} : vector<2x8x1xf32> -> vector<2x8x1xf32>
    %110 = vector.broadcast %109 : vector<2x8x1xf32> to vector<2x8x64xf32>
    %111 = arith.mulf %102, %110 : vector<2x8x64xf32>
    %cst_52 = arith.constant dense<0.000000e+00> : vector<2x2xf32>
    %112 = vector.multi_reduction <add>, %104, %cst_52 [2] : vector<2x2x64xf32> to vector<2x2xf32>
    %113 = vector.shape_cast %112 : vector<2x2xf32> to vector<2x2x1xf32>
    %cst_53 = arith.constant 1.000000e+01 : f32
    %114 = vector.broadcast %cst_53 : f32 to vector<2x2x1xf32>
    %115 = arith.mulf %113, %114 : vector<2x2x1xf32>
    %116 = tpu.reciprocal %115 {approx = true} : vector<2x2x1xf32> -> vector<2x2x1xf32>
    %117 = vector.broadcast %116 : vector<2x2x1xf32> to vector<2x2x64xf32>
    %118 = arith.mulf %104, %117 : vector<2x2x64xf32>
    %cst_54 = arith.constant dense<0.000000e+00> : vector<2x64xf32>
    %119 = vector.multi_reduction <add>, %111, %cst_54 [1] : vector<2x8x64xf32> to vector<2x64xf32>
    %120 = vector.shape_cast %119 : vector<2x64xf32> to vector<2x1x64xf32>
    %cst_55 = arith.constant dense<0.000000e+00> : vector<2x64xf32>
    %121 = vector.multi_reduction <add>, %118, %cst_55 [1] : vector<2x2x64xf32> to vector<2x64xf32>
    %122 = vector.shape_cast %121 : vector<2x64xf32> to vector<2x1x64xf32>
    %123 = arith.addf %120, %122 : vector<2x1x64xf32>
    %cst_56 = arith.constant 6.400000e+01 : f32
    %124 = vector.broadcast %cst_56 : f32 to vector<2x1x64xf32>
    %125 = arith.mulf %123, %124 : vector<2x1x64xf32>
    %126 = tpu.reciprocal %125 {approx = true} : vector<2x1x64xf32> -> vector<2x1x64xf32>
    %127 = vector.broadcast %126 : vector<2x1x64xf32> to vector<2x8x64xf32>
    %128 = arith.mulf %111, %127 : vector<2x8x64xf32>
    %129 = vector.broadcast %126 : vector<2x1x64xf32> to vector<2x2x64xf32>
    %130 = arith.mulf %118, %129 : vector<2x2x64xf32>
    %cst_57 = arith.constant dense<0.000000e+00> : vector<2x8xf32>
    %131 = vector.multi_reduction <add>, %128, %cst_57 [2] : vector<2x8x64xf32> to vector<2x8xf32>
    %132 = vector.shape_cast %131 : vector<2x8xf32> to vector<2x8x1xf32>
    %cst_58 = arith.constant 1.000000e+01 : f32
    %133 = vector.broadcast %cst_58 : f32 to vector<2x8x1xf32>
    %134 = arith.mulf %132, %133 : vector<2x8x1xf32>
    %135 = tpu.reciprocal %134 {approx = true} : vector<2x8x1xf32> -> vector<2x8x1xf32>
    %136 = vector.broadcast %135 : vector<2x8x1xf32> to vector<2x8x64xf32>
    %137 = arith.mulf %128, %136 : vector<2x8x64xf32>
    %cst_59 = arith.constant dense<0.000000e+00> : vector<2x2xf32>
    %138 = vector.multi_reduction <add>, %130, %cst_59 [2] : vector<2x2x64xf32> to vector<2x2xf32>
    %139 = vector.shape_cast %138 : vector<2x2xf32> to vector<2x2x1xf32>
    %cst_60 = arith.constant 1.000000e+01 : f32
    %140 = vector.broadcast %cst_60 : f32 to vector<2x2x1xf32>
    %141 = arith.mulf %139, %140 : vector<2x2x1xf32>
    %142 = tpu.reciprocal %141 {approx = true} : vector<2x2x1xf32> -> vector<2x2x1xf32>
    %143 = vector.broadcast %142 : vector<2x2x1xf32> to vector<2x2x64xf32>
    %144 = arith.mulf %130, %143 : vector<2x2x64xf32>
    %cst_61 = arith.constant dense<0.000000e+00> : vector<2x64xf32>
    %145 = vector.multi_reduction <add>, %137, %cst_61 [1] : vector<2x8x64xf32> to vector<2x64xf32>
    %146 = vector.shape_cast %145 : vector<2x64xf32> to vector<2x1x64xf32>
    %cst_62 = arith.constant dense<0.000000e+00> : vector<2x64xf32>
    %147 = vector.multi_reduction <add>, %144, %cst_62 [1] : vector<2x2x64xf32> to vector<2x64xf32>
    %148 = vector.shape_cast %147 : vector<2x64xf32> to vector<2x1x64xf32>
    %149 = arith.addf %146, %148 : vector<2x1x64xf32>
    %cst_63 = arith.constant 6.400000e+01 : f32
    %150 = vector.broadcast %cst_63 : f32 to vector<2x1x64xf32>
    %151 = arith.mulf %149, %150 : vector<2x1x64xf32>
    %152 = tpu.reciprocal %151 {approx = true} : vector<2x1x64xf32> -> vector<2x1x64xf32>
    %153 = vector.broadcast %152 : vector<2x1x64xf32> to vector<2x8x64xf32>
    %154 = arith.mulf %137, %153 : vector<2x8x64xf32>
    %155 = vector.broadcast %152 : vector<2x1x64xf32> to vector<2x2x64xf32>
    %156 = arith.mulf %144, %155 : vector<2x2x64xf32>
    %cst_64 = arith.constant dense<0.000000e+00> : vector<2x8xf32>
    %157 = vector.multi_reduction <add>, %154, %cst_64 [2] : vector<2x8x64xf32> to vector<2x8xf32>
    %158 = vector.shape_cast %157 : vector<2x8xf32> to vector<2x8x1xf32>
    %cst_65 = arith.constant 1.000000e+01 : f32
    %159 = vector.broadcast %cst_65 : f32 to vector<2x8x1xf32>
    %160 = arith.mulf %158, %159 : vector<2x8x1xf32>
    %161 = tpu.reciprocal %160 {approx = true} : vector<2x8x1xf32> -> vector<2x8x1xf32>
    %162 = vector.broadcast %161 : vector<2x8x1xf32> to vector<2x8x64xf32>
    %163 = arith.mulf %154, %162 : vector<2x8x64xf32>
    %cst_66 = arith.constant dense<0.000000e+00> : vector<2x2xf32>
    %164 = vector.multi_reduction <add>, %156, %cst_66 [2] : vector<2x2x64xf32> to vector<2x2xf32>
    %165 = vector.shape_cast %164 : vector<2x2xf32> to vector<2x2x1xf32>
    %cst_67 = arith.constant 1.000000e+01 : f32
    %166 = vector.broadcast %cst_67 : f32 to vector<2x2x1xf32>
    %167 = arith.mulf %165, %166 : vector<2x2x1xf32>
    %168 = tpu.reciprocal %167 {approx = true} : vector<2x2x1xf32> -> vector<2x2x1xf32>
    %169 = vector.broadcast %168 : vector<2x2x1xf32> to vector<2x2x64xf32>
    %170 = arith.mulf %156, %169 : vector<2x2x64xf32>
    %171 = vector.extract_strided_slice %163 {offsets = [0, 0, 0], sizes = [1, 8, 64], strides = [1, 1, 1]} : vector<2x8x64xf32> to vector<1x8x64xf32>
    %172 = vector.shape_cast %171 : vector<1x8x64xf32> to vector<8x64xf32>
    %173 = vector.extract_strided_slice %163 {offsets = [1, 0, 0], sizes = [1, 8, 64], strides = [1, 1, 1]} : vector<2x8x64xf32> to vector<1x8x64xf32>
    %174 = vector.shape_cast %173 : vector<1x8x64xf32> to vector<8x64xf32>
    %175 = tpu.concatenate %172, %174 in 1 : vector<8x64xf32>, vector<8x64xf32> -> vector<8x128xf32>
    %cst_68 = arith.constant 1.000000e+01 : f32
    %176 = vector.broadcast %cst_68 : f32 to vector<8x128xf32>
    %177 = arith.mulf %175, %176 : vector<8x128xf32>
    %178 = vector.extract_strided_slice %170 {offsets = [0, 0, 0], sizes = [1, 2, 64], strides = [1, 1, 1]} : vector<2x2x64xf32> to vector<1x2x64xf32>
    %179 = vector.shape_cast %178 : vector<1x2x64xf32> to vector<2x64xf32>
    %180 = vector.extract_strided_slice %170 {offsets = [1, 0, 0], sizes = [1, 2, 64], strides = [1, 1, 1]} : vector<2x2x64xf32> to vector<1x2x64xf32>
    %181 = vector.shape_cast %180 : vector<1x2x64xf32> to vector<2x64xf32>
    %182 = tpu.concatenate %179, %181 in 1 : vector<2x64xf32>, vector<2x64xf32> -> vector<2x128xf32>
    %cst_69 = arith.constant 1.000000e+01 : f32
    %183 = vector.broadcast %cst_69 : f32 to vector<2x128xf32>
    %184 = arith.mulf %182, %183 : vector<2x128xf32>
    %185 = tpu.concatenate %177, %184 in 0 : vector<8x128xf32>, vector<2x128xf32> -> vector<10x128xf32>
    %c0_70 = arith.constant 0 : index
    %c0_71 = arith.constant 0 : index
    %186 = vector.load %arg14[%c0_70, %c0_71] : memref<10x128xf32, #tpu.memory_space<vmem>>, vector<10x128xf32>
    tpu.vector_store %arg14[%c0_70, %c0_71], %185 {strides = array<i32>} : memref<10x128xf32, #tpu.memory_space<vmem>>, vector<10x128xf32>,
    %c0_72 = arith.constant 0 : index
    %c0_73 = arith.constant 0 : index
    %187 = vector.load %arg1[%c0_72, %c0_73] : memref<256x36xf32, #tpu.memory_space<vmem>>, vector<256x36xf32>
    %cst_74 = arith.constant dense<0.000000e+00> : vector<256x32xf32>
    %188 = tpu.matmul %187, %0, %cst_74 {dimension_numbers = #tpu.dot_dimension_numbers<[1], [0], [0], [1], [0, 0, 1, 1], [], []>} : vector<256x36xf32>, vector<36x32xf32>, vector<256x32xf32> -> vector<256x32xf32>
    %189 = vector.broadcast %1 : vector<1x32xf32> to vector<256x32xf32>
    %190 = arith.addf %188, %189 : vector<256x32xf32>
    %cst_75 = arith.constant 0.000000e+00 : f32
    %191 = vector.broadcast %cst_75 : f32 to vector<256x32xf32>
    %192 = arith.maximumf %190, %191 : vector<256x32xf32>
    %193 = vector.extract_strided_slice %192 {offsets = [0, 0], sizes = [64, 32], strides = [1, 1]} : vector<256x32xf32> to vector<64x32xf32>
    %cst_76 = arith.constant dense<0.000000e+00> : vector<32xf32>
    %194 = vector.multi_reduction <add>, %193, %cst_76 [0] : vector<64x32xf32> to vector<32xf32>
    %195 = vector.shape_cast %194 : vector<32xf32> to vector<1x32xf32>
    %196 = vector.extract_strided_slice %192 {offsets = [64, 0], sizes = [64, 32], strides = [1, 1]} : vector<256x32xf32> to vector<64x32xf32>
    %cst_77 = arith.constant dense<0.000000e+00> : vector<32xf32>
    %197 = vector.multi_reduction <add>, %196, %cst_77 [0] : vector<64x32xf32> to vector<32xf32>
    %198 = vector.shape_cast %197 : vector<32xf32> to vector<1x32xf32>
    %199 = vector.extract_strided_slice %192 {offsets = [128, 0], sizes = [64, 32], strides = [1, 1]} : vector<256x32xf32> to vector<64x32xf32>
    %cst_78 = arith.constant dense<0.000000e+00> : vector<32xf32>
    %200 = vector.multi_reduction <add>, %199, %cst_78 [0] : vector<64x32xf32> to vector<32xf32>
    %201 = vector.shape_cast %200 : vector<32xf32> to vector<1x32xf32>
    %202 = vector.extract_strided_slice %192 {offsets = [192, 0], sizes = [64, 32], strides = [1, 1]} : vector<256x32xf32> to vector<64x32xf32>
    %cst_79 = arith.constant dense<0.000000e+00> : vector<32xf32>
    %203 = vector.multi_reduction <add>, %202, %cst_79 [0] : vector<64x32xf32> to vector<32xf32>
    %204 = vector.shape_cast %203 : vector<32xf32> to vector<1x32xf32>
    %205 = tpu.concatenate %195, %198, %201, %204 in 0 : vector<1x32xf32>, vector<1x32xf32>, vector<1x32xf32>, vector<1x32xf32> -> vector<4x32xf32>
    %cst_80 = arith.constant 1.562500e-02 : f32
    %206 = vector.broadcast %cst_80 : f32 to vector<4x32xf32>
    %207 = arith.mulf %205, %206 : vector<4x32xf32>
    %cst_81 = arith.constant dense<0.000000e+00> : vector<4x32xf32>
    %208 = tpu.matmul %207, %2, %cst_81 {dimension_numbers = #tpu.dot_dimension_numbers<[1], [0], [0], [1], [0, 0, 1, 1], [], []>} : vector<4x32xf32>, vector<32x32xf32>, vector<4x32xf32> -> vector<4x32xf32>
    %209 = vector.broadcast %3 : vector<1x32xf32> to vector<4x32xf32>
    %210 = arith.addf %208, %209 : vector<4x32xf32>
    %211 = vector.extract_strided_slice %210 {offsets = [0, 0], sizes = [2, 32], strides = [1, 1]} : vector<4x32xf32> to vector<2x32xf32>
    %cst_82 = arith.constant dense<0.000000e+00> : vector<32xf32>
    %212 = vector.multi_reduction <add>, %211, %cst_82 [0] : vector<2x32xf32> to vector<32xf32>
    %213 = vector.shape_cast %212 : vector<32xf32> to vector<1x32xf32>
    %cst_83 = arith.constant 2.000000e+00 : f32
    %214 = vector.broadcast %cst_83 : f32 to vector<1x32xf32>
    %215 = arith.divf %213, %214 : vector<1x32xf32>
    %216 = vector.broadcast %215 : vector<1x32xf32> to vector<2x32xf32>
    %217 = arith.subf %211, %216 : vector<2x32xf32>
    %218 = arith.mulf %217, %217 : vector<2x32xf32>
    %cst_84 = arith.constant dense<0.000000e+00> : vector<32xf32>
    %219 = vector.multi_reduction <add>, %218, %cst_84 [0] : vector<2x32xf32> to vector<32xf32>
    %220 = vector.shape_cast %219 : vector<32xf32> to vector<1x32xf32>
    %cst_85 = arith.constant 2.000000e+00 : f32
    %221 = vector.broadcast %cst_85 : f32 to vector<1x32xf32>
    %222 = arith.divf %220, %221 : vector<1x32xf32>
    %cst_86 = arith.constant 9.99999974E-6 : f32
    %223 = vector.broadcast %cst_86 : f32 to vector<1x32xf32>
    %224 = arith.addf %222, %223 : vector<1x32xf32>
    %225 = math.rsqrt %224 : vector<1x32xf32>
    %226 = vector.broadcast %225 : vector<1x32xf32> to vector<2x32xf32>
    %227 = arith.mulf %217, %226 : vector<2x32xf32>
    %228 = vector.extract_strided_slice %210 {offsets = [2, 0], sizes = [2, 32], strides = [1, 1]} : vector<4x32xf32> to vector<2x32xf32>
    %cst_87 = arith.constant dense<0.000000e+00> : vector<32xf32>
    %229 = vector.multi_reduction <add>, %228, %cst_87 [0] : vector<2x32xf32> to vector<32xf32>
    %230 = vector.shape_cast %229 : vector<32xf32> to vector<1x32xf32>
    %cst_88 = arith.constant 2.000000e+00 : f32
    %231 = vector.broadcast %cst_88 : f32 to vector<1x32xf32>
    %232 = arith.divf %230, %231 : vector<1x32xf32>
    %233 = vector.broadcast %232 : vector<1x32xf32> to vector<2x32xf32>
    %234 = arith.subf %228, %233 : vector<2x32xf32>
    %235 = arith.mulf %234, %234 : vector<2x32xf32>
    %cst_89 = arith.constant dense<0.000000e+00> : vector<32xf32>
    %236 = vector.multi_reduction <add>, %235, %cst_89 [0] : vector<2x32xf32> to vector<32xf32>
    %237 = vector.shape_cast %236 : vector<32xf32> to vector<1x32xf32>
    %cst_90 = arith.constant 2.000000e+00 : f32
    %238 = vector.broadcast %cst_90 : f32 to vector<1x32xf32>
    %239 = arith.divf %237, %238 : vector<1x32xf32>
    %cst_91 = arith.constant 9.99999974E-6 : f32
    %240 = vector.broadcast %cst_91 : f32 to vector<1x32xf32>
    %241 = arith.addf %239, %240 : vector<1x32xf32>
    %242 = math.rsqrt %241 : vector<1x32xf32>
    %243 = vector.broadcast %242 : vector<1x32xf32> to vector<2x32xf32>
    %244 = arith.mulf %234, %243 : vector<2x32xf32>
    %245 = tpu.concatenate %227, %244 in 0 : vector<2x32xf32>, vector<2x32xf32> -> vector<4x32xf32>
    %246 = vector.broadcast %4 : vector<1x32xf32> to vector<4x32xf32>
    %247 = arith.mulf %245, %246 : vector<4x32xf32>
    %248 = vector.broadcast %5 : vector<1x32xf32> to vector<4x32xf32>
    %249 = arith.addf %247, %248 : vector<4x32xf32>
    %cst_92 = arith.constant 0.000000e+00 : f32
    %250 = vector.broadcast %cst_92 : f32 to vector<4x32xf32>
    %251 = arith.maximumf %249, %250 : vector<4x32xf32>
    %cst_93 = arith.constant dense<0.000000e+00> : vector<4x16xf32>
    %252 = tpu.matmul %251, %6, %cst_93 {dimension_numbers = #tpu.dot_dimension_numbers<[1], [0], [0], [1], [0, 0, 1, 1], [], []>} : vector<4x32xf32>, vector<32x16xf32>, vector<4x16xf32> -> vector<4x16xf32>
    %253 = vector.broadcast %7 : vector<1x16xf32> to vector<4x16xf32>
    %254 = arith.addf %252, %253 : vector<4x16xf32>
    %255 = arith.mulf %254, %254 : vector<4x16xf32>
    %cst_94 = arith.constant dense<0.000000e+00> : vector<4xf32>
    %256 = vector.multi_reduction <add>, %255, %cst_94 [1] : vector<4x16xf32> to vector<4xf32>
    %257 = vector.shape_cast %256 : vector<4xf32> to vector<4x1xf32>
    %cst_95 = arith.constant 1.000000e-24 : f32
    %258 = vector.broadcast %cst_95 : f32 to vector<4x1xf32>
    %259 = arith.maximumf %257, %258 : vector<4x1xf32>
    %260 = math.rsqrt %259 : vector<4x1xf32>
    %261 = vector.broadcast %260 : vector<4x1xf32> to vector<4x16xf32>
    %262 = arith.mulf %254, %261 : vector<4x16xf32>
    %cst_96 = arith.constant dense<0.000000e+00> : vector<4x64xf32>
    %263 = tpu.matmul %262, %8, %cst_96 {dimension_numbers = #tpu.dot_dimension_numbers<[1], [0], [0], [1], [0, 0, 1, 1], [], []>} : vector<4x16xf32>, vector<16x64xf32>, vector<4x64xf32> -> vector<4x64xf32>
    %c0_97 = arith.constant 0 : index
    %c0_98 = arith.constant 0 : index
    %264 = vector.load %arg15[%c0_97, %c0_98] : memref<4x64xf32, #tpu.memory_space<vmem>>, vector<4x64xf32>
    tpu.vector_store %arg15[%c0_97, %c0_98], %263 {strides = array<i32>} : memref<4x64xf32, #tpu.memory_space<vmem>>, vector<4x64xf32>,
    return
  }
}

</mosaic_0001>

<llo_original>
// kernel: _swav_forward.1
$region0: #{_swav_forward.1}
  #allocation0 [shape = 'u32[]', space=smem, size = 0x4, offset = 0x4, fixed_abs, tag = 'smem constant byte address 0x4 - core index']
  #allocation1 [shape = 'u32[144,128]{1,0:T(1,128)}', space=vmem, size = 0x12000, scoped, tag = 'internal scratch']
  %s0 = inlined_call_operand.vmem [shape: f32[512,36], index: 0, kind: input, shape index: {}]
  %s1 = inlined_call_operand.vmem [shape: f32[256,36], index: 1, kind: input, shape index: {}]
  %s2 = inlined_call_operand.vmem [shape: f32[36,32], index: 2, kind: input, shape index: {}]
  %s3 = inlined_call_operand.vmem [shape: f32[1,32], index: 3, kind: input, shape index: {}]
  %s4 = inlined_call_operand.vmem [shape: f32[32,32], index: 4, kind: input, shape index: {}]
  %s5 = inlined_call_operand.vmem [shape: f32[1,32], index: 5, kind: input, shape index: {}]
  %s6 = inlined_call_operand.vmem [shape: f32[1,32], index: 6, kind: input, shape index: {}]
  %s7 = inlined_call_operand.vmem [shape: f32[1,32], index: 7, kind: input, shape index: {}]
  %s8 = inlined_call_operand.vmem [shape: f32[32,16], index: 8, kind: input, shape index: {}]
  %s9 = inlined_call_operand.vmem [shape: f32[1,16], index: 9, kind: input, shape index: {}]
  %s10 = inlined_call_operand.vmem [shape: f32[16,64], index: 10, kind: input, shape index: {}]
  %s11 = inlined_call_operand.vmem [shape: f32[16,16], index: 11, kind: input, shape index: {}]
  %s12 = inlined_call_operand.vmem [shape: f32[2,16], index: 12, kind: output, shape index: {0}]
  %s13 = inlined_call_operand.vmem [shape: f32[2,64], index: 13, kind: output, shape index: {1}]
  %s14 = inlined_call_operand.vmem [shape: f32[10,128], index: 14, kind: output, shape index: {2}]
  %s15 = inlined_call_operand.vmem [shape: f32[4,64], index: 15, kind: output, shape index: {3}]
  %16 = xla_tuple %s12, %s13, %s14, %s15
  %s17 = sld [smem:[#allocation0]]
  $region82: #{_swav_forward.1} parent=0
    _
  %s19 = ssub.s32 1, %s17
  %s20 = scalar_select 0, %s19, %s17
  // Predicated region
  $region2: #{_swav_forward.1} parent=0 // pred_check
    _
  $region3: #{_swav_forward.1} parent=0 // pred_check_branch
    %22 = sbr.rel (0) target = $region5
  $region4: #{_swav_forward.1} parent=0 // pred_region
    _
  $region5: #{_swav_forward.1} parent=0 // pred_fallthru
    _
  // Predicated region
  $region6: #{_swav_forward.1} parent=0 // pred_check
    _
  $region7: #{_swav_forward.1} parent=0 // pred_check_branch
    %24 = sbr.rel (0) target = $region9
  $region8: #{_swav_forward.1} parent=0 // pred_region
    _
  $region9: #{_swav_forward.1} parent=0 // pred_fallthru
    _
  // Predicated region
  $region10: #{_swav_forward.1} parent=0 // pred_check
    _
  $region11: #{_swav_forward.1} parent=0 // pred_check_branch
    %26 = sbr.rel (0) target = $region13
  $region12: #{_swav_forward.1} parent=0 // pred_region
    _
  $region13: #{_swav_forward.1} parent=0 // pred_fallthru
    _
  // Predicated region
  $region14: #{_swav_forward.1} parent=0 // pred_check
    _
  $region15: #{_swav_forward.1} parent=0 // pred_check_branch
    %28 = sbr.rel (0) target = $region17
  $region16: #{_swav_forward.1} parent=0 // pred_region
    _
  $region17: #{_swav_forward.1} parent=0 // pred_fallthru
    _
  // Predicated region
  $region18: #{_swav_forward.1} parent=0 // pred_check
    _
  $region19: #{_swav_forward.1} parent=0 // pred_check_branch
    %30 = sbr.rel (0) target = $region21
  $region20: #{_swav_forward.1} parent=0 // pred_region
    _
  $region21: #{_swav_forward.1} parent=0 // pred_fallthru
    _
  // Predicated region
  $region22: #{_swav_forward.1} parent=0 // pred_check
    _
  $region23: #{_swav_forward.1} parent=0 // pred_check_branch
    %32 = sbr.rel (0) target = $region25
  $region24: #{_swav_forward.1} parent=0 // pred_region
    _
  $region25: #{_swav_forward.1} parent=0 // pred_fallthru
    _
  // Predicated region
  $region26: #{_swav_forward.1} parent=0 // pred_check
    _
  $region27: #{_swav_forward.1} parent=0 // pred_check_branch
    %34 = sbr.rel (0) target = $region29
  $region28: #{_swav_forward.1} parent=0 // pred_region
    _
  $region29: #{_swav_forward.1} parent=0 // pred_fallthru
    _
  // Predicated region
  $region30: #{_swav_forward.1} parent=0 // pred_check
    _
  $region31: #{_swav_forward.1} parent=0 // pred_check_branch
    %36 = sbr.rel (0) target = $region33
  $region32: #{_swav_forward.1} parent=0 // pred_region
    _
  $region33: #{_swav_forward.1} parent=0 // pred_fallthru
    _
  // Predicated region
  $region34: #{_swav_forward.1} parent=0 // pred_check
    _
  $region35: #{_swav_forward.1} parent=0 // pred_check_branch
    %38 = sbr.rel (0) target = $region37
  $region36: #{_swav_forward.1} parent=0 // pred_region
    _
  $region37: #{_swav_forward.1} parent=0 // pred_fallthru
    _
  // Predicated region
  $region38: #{_swav_forward.1} parent=0 // pred_check
    _
  $region39: #{_swav_forward.1} parent=0 // pred_check_branch
    %40 = sbr.rel (0) target = $region41
  $region40: #{_swav_forward.1} parent=0 // pred_region
    _
  $region41: #{_swav_forward.1} parent=0 // pred_fallthru
    _
  // Predicated region
  $region42: #{_swav_forward.1} parent=0 // pred_check
    _
  $region43: #{_swav_forward.1} parent=0 // pred_check_branch
    %42 = sbr.rel (0) target = $region45
  $region44: #{_swav_forward.1} parent=0 // pred_region
    _
  $region45: #{_swav_forward.1} parent=0 // pred_fallthru
    _
  // Predicated region
  $region46: #{_swav_forward.1} parent=0 // pred_check
    _
  $region47: #{_swav_forward.1} parent=0 // pred_check_branch
    %44 = sbr.rel (0) target = $region49
  $region48: #{_swav_forward.1} parent=0 // pred_region
    _
  $region49: #{_swav_forward.1} parent=0 // pred_fallthru
    _
  %v45 = vld [vmem:[%s2] sm:$0xff]
  %v46 = vld [vmem:[%s2 + $0x8] sm:$0xff]
  %v47 = vld [vmem:[%s2 + $0x10] sm:$0xff]
  %v48 = vld [vmem:[%s2 + $0x18] sm:$0xff]
  %v49 = vld [vmem:[%s2 + $0x20] sm:$0xf]
  %v50 = vld [vmem:[%s3] sm:$0x1]
  %v51 = vld [vmem:[%s4] sm:$0xff]
  %v52 = vld [vmem:[%s4 + $0x8] sm:$0xff]
  %v53 = vld [vmem:[%s4 + $0x10] sm:$0xff]
  %v54 = vld [vmem:[%s4 + $0x18] sm:$0xff]
  %v55 = vld [vmem:[%s5] sm:$0x1]
  %v56 = vld [vmem:[%s6] sm:$0x1]
  %v57 = vld [vmem:[%s7] sm:$0x1]
  %v58 = vld [vmem:[%s8] sm:$0xff]
  %v59 = vld [vmem:[%s8 + $0x8] sm:$0xff]
  %v60 = vld [vmem:[%s8 + $0x10] sm:$0xff]
  %v61 = vld [vmem:[%s8 + $0x18] sm:$0xff]
  %v62 = vld [vmem:[%s9] sm:$0x1]
  %v63 = vld [vmem:[%s10] sm:$0xff]
  %v64 = vld [vmem:[%s10 + $0x8] sm:$0xff]
  %v65 = vld [vmem:[%s0] sm:$0xff]
  %v66 = vld [vmem:[%s0 + $0x8] sm:$0xff]
  %v67 = vld [vmem:[%s0 + $0x10] sm:$0xff]
  %v68 = vld [vmem:[%s0 + $0x18] sm:$0xff]
  %v69 = vld [vmem:[%s0 + $0x20] sm:$0xff]
  %v70 = vld [vmem:[%s0 + $0x28] sm:$0xff]
  %v71 = vld [vmem:[%s0 + $0x30] sm:$0xff]
  %v72 = vld [vmem:[%s0 + $0x38] sm:$0xff]
  %v73 = vld [vmem:[%s0 + $0x40] sm:$0xff]
  %v74 = vld [vmem:[%s0 + $0x48] sm:$0xff]
  %v75 = vld [vmem:[%s0 + $0x50] sm:$0xff]
  %v76 = vld [vmem:[%s0 + $0x58] sm:$0xff]
  %v77 = vld [vmem:[%s0 + $0x60] sm:$0xff]
  %v78 = vld [vmem:[%s0 + $0x68] sm:$0xff]
  %v79 = vld [vmem:[%s0 + $0x70] sm:$0xff]
  %v80 = vld [vmem:[%s0 + $0x78] sm:$0xff]
  %v81 = vld [vmem:[%s0 + $0x80] sm:$0xff]
  %v82 = vld [vmem:[%s0 + $0x88] sm:$0xff]
  %v83 = vld [vmem:[%s0 + $0x90] sm:$0xff]
  %v84 = vld [vmem:[%s0 + $0x98] sm:$0xff]
  %v85 = vld [vmem:[%s0 + $0xa0] sm:$0xff]
  %v86 = vld [vmem:[%s0 + $0xa8] sm:$0xff]
  %v87 = vld [vmem:[%s0 + $0xb0] sm:$0xff]
  %v88 = vld [vmem:[%s0 + $0xb8] sm:$0xff]
  %v89 = vld [vmem:[%s0 + $0xc0] sm:$0xff]
  %v90 = vld [vmem:[%s0 + $0xc8] sm:$0xff]
  %v91 = vld [vmem:[%s0 + $0xd0] sm:$0xff]
  %v92 = vld [vmem:[%s0 + $0xd8] sm:$0xff]
  %v93 = vld [vmem:[%s0 + $0xe0] sm:$0xff]
  %v94 = vld [vmem:[%s0 + $0xe8] sm:$0xff]
  %v95 = vld [vmem:[%s0 + $0xf0] sm:$0xff]
  %v96 = vld [vmem:[%s0 + $0xf8] sm:$0xff]
  %v97 = vld [vmem:[%s0 + $0x100] sm:$0xff]
  %v98 = vld [vmem:[%s0 + $0x108] sm:$0xff]
  %v99 = vld [vmem:[%s0 + $0x110] sm:$0xff]
  %v100 = vld [vmem:[%s0 + $0x118] sm:$0xff]
  %v101 = vld [vmem:[%s0 + $0x120] sm:$0xff]
  %v102 = vld [vmem:[%s0 + $0x128] sm:$0xff]
  %v103 = vld [vmem:[%s0 + $0x130] sm:$0xff]
  %v104 = vld [vmem:[%s0 + $0x138] sm:$0xff]
  %v105 = vld [vmem:[%s0 + $0x140] sm:$0xff]
  %v106 = vld [vmem:[%s0 + $0x148] sm:$0xff]
  %v107 = vld [vmem:[%s0 + $0x150] sm:$0xff]
  %v108 = vld [vmem:[%s0 + $0x158] sm:$0xff]
  %v109 = vld [vmem:[%s0 + $0x160] sm:$0xff]
  %v110 = vld [vmem:[%s0 + $0x168] sm:$0xff]
  %v111 = vld [vmem:[%s0 + $0x170] sm:$0xff]
  %v112 = vld [vmem:[%s0 + $0x178] sm:$0xff]
  %v113 = vld [vmem:[%s0 + $0x180] sm:$0xff]
  %v114 = vld [vmem:[%s0 + $0x188] sm:$0xff]
  %v115 = vld [vmem:[%s0 + $0x190] sm:$0xff]
  %v116 = vld [vmem:[%s0 + $0x198] sm:$0xff]
  %v117 = vld [vmem:[%s0 + $0x1a0] sm:$0xff]
  %v118 = vld [vmem:[%s0 + $0x1a8] sm:$0xff]
  %v119 = vld [vmem:[%s0 + $0x1b0] sm:$0xff]
  %v120 = vld [vmem:[%s0 + $0x1b8] sm:$0xff]
  %v121 = vld [vmem:[%s0 + $0x1c0] sm:$0xff]
  %v122 = vld [vmem:[%s0 + $0x1c8] sm:$0xff]
  %v123 = vld [vmem:[%s0 + $0x1d0] sm:$0xff]
  %v124 = vld [vmem:[%s0 + $0x1d8] sm:$0xff]
  %v125 = vld [vmem:[%s0 + $0x1e0] sm:$0xff]
  %v126 = vld [vmem:[%s0 + $0x1e8] sm:$0xff]
  %v127 = vld [vmem:[%s0 + $0x1f0] sm:$0xff]
  %v128 = vld [vmem:[%s0 + $0x1f8] sm:$0xff]
  %v130 = vlaneseq
  %v131 = vshrl.u32 %v130, 7
  %v132 = vsub.s32 0, %v131
  %v133 = vrot.slane %v50, %v132
  %vm135 = vcmask 293888
  %v137 = vsel %vm135, %v65, 0
  %v140 = vsel %vm135, %v66, 0
  %v143 = vsel %vm135, %v67, 0
  %v146 = vsel %vm135, %v68, 0
  %v149 = vsel %vm135, %v69, 0
  %v152 = vsel %vm135, %v70, 0
  %v155 = vsel %vm135, %v71, 0
  %v158 = vsel %vm135, %v72, 0
  %v161 = vsel %vm135, %v73, 0
  %v164 = vsel %vm135, %v74, 0
  %v167 = vsel %vm135, %v75, 0
  %v170 = vsel %vm135, %v76, 0
  %v173 = vsel %vm135, %v77, 0
  %v176 = vsel %vm135, %v78, 0
  %v179 = vsel %vm135, %v79, 0
  %v182 = vsel %vm135, %v80, 0
  %v185 = vsel %vm135, %v81, 0
  %v188 = vsel %vm135, %v82, 0
  %v191 = vsel %vm135, %v83, 0
  %v194 = vsel %vm135, %v84, 0
  %v197 = vsel %vm135, %v85, 0
  %v200 = vsel %vm135, %v86, 0
  %v203 = vsel %vm135, %v87, 0
  %v206 = vsel %vm135, %v88, 0
  %v209 = vsel %vm135, %v89, 0
  %v212 = vsel %vm135, %v90, 0
  %v215 = vsel %vm135, %v91, 0
  %v218 = vsel %vm135, %v92, 0
  %v221 = vsel %vm135, %v93, 0
  %v224 = vsel %vm135, %v94, 0
  %v227 = vsel %vm135, %v95, 0
  %v230 = vsel %vm135, %v96, 0
  %v233 = vsel %vm135, %v97, 0
  %v236 = vsel %vm135, %v98, 0
  %v239 = vsel %vm135, %v99, 0
  %v242 = vsel %vm135, %v100, 0
  %v245 = vsel %vm135, %v101, 0
  %v248 = vsel %vm135, %v102, 0
  %v251 = vsel %vm135, %v103, 0
  %v254 = vsel %vm135, %v104, 0
  %v257 = vsel %vm135, %v105, 0
  %v260 = vsel %vm135, %v106, 0
  %v263 = vsel %vm135, %v107, 0
  %v266 = vsel %vm135, %v108, 0
  %v269 = vsel %vm135, %v109, 0
  %v272 = vsel %vm135, %v110, 0
  %v275 = vsel %vm135, %v111, 0
  %v278 = vsel %vm135, %v112, 0
  %v281 = vsel %vm135, %v113, 0
  %v284 = vsel %vm135, %v114, 0
  %v287 = vsel %vm135, %v115, 0
  %v290 = vsel %vm135, %v116, 0
  %v293 = vsel %vm135, %v117, 0
  %v296 = vsel %vm135, %v118, 0
  %v299 = vsel %vm135, %v119, 0
  %v302 = vsel %vm135, %v120, 0
  %v305 = vsel %vm135, %v121, 0
  %v308 = vsel %vm135, %v122, 0
  %v311 = vsel %vm135, %v123, 0
  %v314 = vsel %vm135, %v124, 0
  %v317 = vsel %vm135, %v125, 0
  %v320 = vsel %vm135, %v126, 0
  %v323 = vsel %vm135, %v127, 0
  %v326 = vsel %vm135, %v128, 0
  %vm328 = vcmask 1043456
  %v330 = vsel %vm328, %v49, 0
  %332 = vmatprep.subr.mxu0 0.0
  %333 = vmatpush1.msra.mxu0 %v45
  %334 = vmatprep.subr.mxu0 0.0
  %335 = vmatpush1.msra.mxu0 %v46
  %336 = vmatprep.subr.mxu0 0.0
  %337 = vmatpush1.msra.mxu0 %v47
  %338 = vmatprep.subr.mxu0 0.0
  %339 = vmatpush1.msra.mxu0 %v48
  %340 = vmatprep.subr.mxu0 0.0
  %341 = vmatpush1.msra.mxu0 %v330
  %342 = vmatprep.subr.mxu0 0.0
  %343 = vmatpush1.msra.mxu0 0.0
  %344 = vmatprep.subr.mxu0 0.0
  %345 = vmatpush1.msra.mxu0 0.0
  %346 = vmatprep.subr.mxu0 0.0
  %347 = vmatpush1.msra.mxu0 0.0
  %348 = vmatprep.subr.mxu0 0.0
  %349 = vmatpush1.msra.mxu0 0.0
  %350 = vmatprep.subr.mxu0 0.0
  %351 = vmatpush1.msra.mxu0 0.0
  %352 = vmatprep.subr.mxu0 0.0
  %353 = vmatpush1.msra.mxu0 0.0
  %354 = vmatprep.subr.mxu0 0.0
  %355 = vmatpush1.msra.mxu0 0.0
  %356 = vmatprep.subr.mxu0 0.0
  %357 = vmatpush1.msra.mxu0 0.0
  %358 = vmatprep.subr.mxu0 0.0
  %359 = vmatpush1.msra.mxu0 0.0
  %360 = vmatprep.subr.mxu0 0.0
  %361 = vmatpush1.msra.mxu0 0.0
  %362 = vmatprep.subr.mxu0 0.0
  %363 = vmatpush1.msra.mxu0 0.0
  %364 = vmatprep.subr.mxu0 0.0
  %365 = vmatpush1.msra.mxu0 0.0
  %366 = vmatprep.subr.mxu0 0.0
  %367 = vmatpush1.msra.mxu0 0.0
  %368 = vmatprep.subr.mxu0 0.0
  %369 = vmatpush1.msra.mxu0 0.0
  %370 = vmatprep.subr.mxu0 0.0
  %371 = vmatpush1.msra.mxu0 0.0
  %372 = vmatprep.subr.mxu0 0.0
  %373 = vmatpush1.msra.mxu0 0.0
  %374 = vmatprep.subr.mxu0 0.0
  %375 = vmatpush1.msra.mxu0 0.0
  %376 = vmatprep.subr.mxu0 0.0
  %377 = vmatpush1.msra.mxu0 0.0
  %378 = vmatprep.subr.mxu0 0.0
  %379 = vmatpush1.msra.mxu0 0.0
  %380 = vmatprep.subr.mxu0 0.0
  %381 = vmatpush1.msra.mxu0 0.0
  %382 = vmatprep.subr.mxu0 0.0
  %383 = vmatpush1.msra.mxu0 0.0
  %384 = vmatprep.subr.mxu0 0.0
  %385 = vmatpush1.msra.mxu0 0.0
  %386 = vmatprep.subr.mxu0 0.0
  %387 = vmatpush1.msra.mxu0 0.0
  %388 = vmatprep.subr.mxu0 0.0
  %389 = vmatpush1.msra.mxu0 0.0
  %390 = vmatprep.subr.mxu0 0.0
  %391 = vmatpush1.msra.mxu0 0.0
  %392 = vmatprep.subr.mxu0 0.0
  %393 = vmatpush1.msra.mxu0 0.0
  %394 = vmatprep.subr.mxu0 0.0
  %395 = vmatpush1.msra.mxu0 0.0
  %396 = vmatprep.mubr.f32.mxu0 0.0
  %397 = vmatmul.mubr.f32.gmra.mrb[0].mxu0 %v137
  %v398 = vpop.f32.mrb[0].mxu0
  %v399 = vadd.f32 %v133, %v398
  %v400 = vpop.f32.mrb[0].mxu0
  %401 = vmatprep.mubr.f32.mxu0 0.0
  %402 = vmatmul.mubr.f32.gmra.mrb[0].mxu0 %v140
  %v403 = vpop.f32.mrb[0].mxu0
  %v404 = vadd.f32 %v133, %v403
  %v405 = vpop.f32.mrb[0].mxu0
  %406 = vmatprep.mubr.f32.mxu0 0.0
  %407 = vmatmul.mubr.f32.gmra.mrb[0].mxu0 %v143
  %v408 = vpop.f32.mrb[0].mxu0
  %v409 = vadd.f32 %v133, %v408
  %v410 = vpop.f32.mrb[0].mxu0
  %411 = vmatprep.mubr.f32.mxu0 0.0
  %412 = vmatmul.mubr.f32.gmra.mrb[0].mxu0 %v146
  %v413 = vpop.f32.mrb[0].mxu0
  %v414 = vadd.f32 %v133, %v413
  %v415 = vpop.f32.mrb[0].mxu0
  %416 = vmatprep.mubr.f32.mxu0 0.0
  %417 = vmatmul.mubr.f32.gmra.mrb[0].mxu0 %v149
  %v418 = vpop.f32.mrb[0].mxu0
  %v419 = vadd.f32 %v133, %v418
  %v420 = vpop.f32.mrb[0].mxu0
  %421 = vmatprep.mubr.f32.mxu0 0.0
  %422 = vmatmul.mubr.f32.gmra.mrb[0].mxu0 %v152
  %v423 = vpop.f32.mrb[0].mxu0
  %v424 = vadd.f32 %v133, %v423
  %v425 = vpop.f32.mrb[0].mxu0
  %426 = vmatprep.mubr.f32.mxu0 0.0
  %427 = vmatmul.mubr.f32.gmra.mrb[0].mxu0 %v155
  %v428 = vpop.f32.mrb[0].mxu0
  %v429 = vadd.f32 %v133, %v428
  %v430 = vpop.f32.mrb[0].mxu0
  %431 = vmatprep.mubr.f32.mxu0 0.0
  %432 = vmatmul.mubr.f32.gmra.mrb[0].mxu0 %v158
  %v433 = vpop.f32.mrb[0].mxu0
  %v434 = vadd.f32 %v133, %v433
  %v435 = vpop.f32.mrb[0].mxu0
  %436 = vmatprep.mubr.f32.mxu0 0.0
  %437 = vmatmul.mubr.f32.gmra.mrb[0].mxu0 %v161
  %v438 = vpop.f32.mrb[0].mxu0
  %v439 = vadd.f32 %v133, %v438
  %v440 = vpop.f32.mrb[0].mxu0
  %441 = vmatprep.mubr.f32.mxu0 0.0
  %442 = vmatmul.mubr.f32.gmra.mrb[0].mxu0 %v164
  %v443 = vpop.f32.mrb[0].mxu0
  %v444 = vadd.f32 %v133, %v443
  %v445 = vpop.f32.mrb[0].mxu0
  %446 = vmatprep.mubr.f32.mxu0 0.0
  %447 = vmatmul.mubr.f32.gmra.mrb[0].mxu0 %v167
  %v448 = vpop.f32.mrb[0].mxu0
  %v449 = vadd.f32 %v133, %v448
  %v450 = vpop.f32.mrb[0].mxu0
  %451 = vmatprep.mubr.f32.mxu0 0.0
  %452 = vmatmul.mubr.f32.gmra.mrb[0].mxu0 %v170
  %v453 = vpop.f32.mrb[0].mxu0
  %v454 = vadd.f32 %v133, %v453
  %v455 = vpop.f32.mrb[0].mxu0
  %456 = vmatprep.mubr.f32.mxu0 0.0
  %457 = vmatmul.mubr.f32.gmra.mrb[0].mxu0 %v173
  %v458 = vpop.f32.mrb[0].mxu0
  %v459 = vadd.f32 %v133, %v458
  %v460 = vpop.f32.mrb[0].mxu0
  %461 = vmatprep.mubr.f32.mxu0 0.0
  %462 = vmatmul.mubr.f32.gmra.mrb[0].mxu0 %v176
  %v463 = vpop.f32.mrb[0].mxu0
  %v464 = vadd.f32 %v133, %v463
  %v465 = vpop.f32.mrb[0].mxu0
  %466 = vmatprep.mubr.f32.mxu0 0.0
  %467 = vmatmul.mubr.f32.gmra.mrb[0].mxu0 %v179
  %v468 = vpop.f32.mrb[0].mxu0
  %v469 = vadd.f32 %v133, %v468
  %v470 = vpop.f32.mrb[0].mxu0
  %471 = vmatprep.mubr.f32.mxu0 0.0
  %472 = vmatmul.mubr.f32.gmra.mrb[0].mxu0 %v182
  %v473 = vpop.f32.mrb[0].mxu0
  %v474 = vadd.f32 %v133, %v473
  %v475 = vpop.f32.mrb[0].mxu0
  %476 = vmatprep.mubr.f32.mxu0 0.0
  %477 = vmatmul.mubr.f32.gmra.mrb[0].mxu0 %v185
  %v478 = vpop.f32.mrb[0].mxu0
  %v479 = vadd.f32 %v133, %v478
  %v480 = vpop.f32.mrb[0].mxu0
  %481 = vmatprep.mubr.f32.mxu0 0.0
  %482 = vmatmul.mubr.f32.gmra.mrb[0].mxu0 %v188
  %v483 = vpop.f32.mrb[0].mxu0
  %v484 = vadd.f32 %v133, %v483
  %v485 = vpop.f32.mrb[0].mxu0
  %486 = vmatprep.mubr.f32.mxu0 0.0
  %487 = vmatmul.mubr.f32.gmra.mrb[0].mxu0 %v191
  %v488 = vpop.f32.mrb[0].mxu0
  %v489 = vadd.f32 %v133, %v488
  %v490 = vpop.f32.mrb[0].mxu0
  %491 = vmatprep.mubr.f32.mxu0 0.0
  %492 = vmatmul.mubr.f32.gmra.mrb[0].mxu0 %v194
  %v493 = vpop.f32.mrb[0].mxu0
  %v494 = vadd.f32 %v133, %v493
  %v495 = vpop.f32.mrb[0].mxu0
  %496 = vmatprep.mubr.f32.mxu0 0.0
  %497 = vmatmul.mubr.f32.gmra.mrb[0].mxu0 %v197
  %v498 = vpop.f32.mrb[0].mxu0
  %v499 = vadd.f32 %v133, %v498
  %v500 = vpop.f32.mrb[0].mxu0
  %501 = vmatprep.mubr.f32.mxu0 0.0
  %502 = vmatmul.mubr.f32.gmra.mrb[0].mxu0 %v200
  %v503 = vpop.f32.mrb[0].mxu0
  %v504 = vadd.f32 %v133, %v503
  %v505 = vpop.f32.mrb[0].mxu0
  %506 = vmatprep.mubr.f32.mxu0 0.0
  %507 = vmatmul.mubr.f32.gmra.mrb[0].mxu0 %v203
  %v508 = vpop.f32.mrb[0].mxu0
  %v509 = vadd.f32 %v133, %v508
  %v510 = vpop.f32.mrb[0].mxu0
  %511 = vmatprep.mubr.f32.mxu0 0.0
  %512 = vmatmul.mubr.f32.gmra.mrb[0].mxu0 %v206
  %v513 = vpop.f32.mrb[0].mxu0
  %v514 = vadd.f32 %v133, %v513
  %v515 = vpop.f32.mrb[0].mxu0
  %516 = vmatprep.mubr.f32.mxu0 0.0
  %517 = vmatmul.mubr.f32.gmra.mrb[0].mxu0 %v209
  %v518 = vpop.f32.mrb[0].mxu0
  %v519 = vadd.f32 %v133, %v518
  %v520 = vpop.f32.mrb[0].mxu0
  %521 = vmatprep.mubr.f32.mxu0 0.0
  %522 = vmatmul.mubr.f32.gmra.mrb[0].mxu0 %v212
  %v523 = vpop.f32.mrb[0].mxu0
  %v524 = vadd.f32 %v133, %v523
  %v525 = vpop.f32.mrb[0].mxu0
  %526 = vmatprep.mubr.f32.mxu0 0.0
  %527 = vmatmul.mubr.f32.gmra.mrb[0].mxu0 %v215
  %v528 = vpop.f32.mrb[0].mxu0
  %v529 = vadd.f32 %v133, %v528
  %v530 = vpop.f32.mrb[0].mxu0
  %531 = vmatprep.mubr.f32.mxu0 0.0
  %532 = vmatmul.mubr.f32.gmra.mrb[0].mxu0 %v218
  %v533 = vpop.f32.mrb[0].mxu0
  %v534 = vadd.f32 %v133, %v533
  %v535 = vpop.f32.mrb[0].mxu0
  %536 = vmatprep.mubr.f32.mxu0 0.0
  %537 = vmatmul.mubr.f32.gmra.mrb[0].mxu0 %v221
  %v538 = vpop.f32.mrb[0].mxu0
  %v539 = vadd.f32 %v133, %v538
  %v540 = vpop.f32.mrb[0].mxu0
  %541 = vmatprep.mubr.f32.mxu0 0.0
  %542 = vmatmul.mubr.f32.gmra.mrb[0].mxu0 %v224
  %v543 = vpop.f32.mrb[0].mxu0
  %v544 = vadd.f32 %v133, %v543
  %v545 = vpop.f32.mrb[0].mxu0
  %546 = vmatprep.mubr.f32.mxu0 0.0
  %547 = vmatmul.mubr.f32.gmra.mrb[0].mxu0 %v227
  %v548 = vpop.f32.mrb[0].mxu0
  %v549 = vadd.f32 %v133, %v548
  %v550 = vpop.f32.mrb[0].mxu0
  %551 = vmatprep.mubr.f32.mxu0 0.0
  %552 = vmatmul.mubr.f32.gmra.mrb[0].mxu0 %v230
  %v553 = vpop.f32.mrb[0].mxu0
  %v554 = vadd.f32 %v133, %v553
  %v555 = vpop.f32.mrb[0].mxu0
  %556 = vmatprep.mubr.f32.mxu0 0.0
  %557 = vmatmul.mubr.f32.gmra.mrb[0].mxu0 %v233
  %v558 = vpop.f32.mrb[0].mxu0
  %v559 = vadd.f32 %v133, %v558
  %v560 = vpop.f32.mrb[0].mxu0
  %561 = vmatprep.mubr.f32.mxu0 0.0
  %562 = vmatmul.mubr.f32.gmra.mrb[0].mxu0 %v236
  %v563 = vpop.f32.mrb[0].mxu0
  %v564 = vadd.f32 %v133, %v563
  %v565 = vpop.f32.mrb[0].mxu0
  %566 = vmatprep.mubr.f32.mxu0 0.0
  %567 = vmatmul.mubr.f32.gmra.mrb[0].mxu0 %v239
  %v568 = vpop.f32.mrb[0].mxu0
  %v569 = vadd.f32 %v133, %v568
  %v570 = vpop.f32.mrb[0].mxu0
  %571 = vmatprep.mubr.f32.mxu0 0.0
  %572 = vmatmul.mubr.f32.gmra.mrb[0].mxu0 %v242
  %v573 = vpop.f32.mrb[0].mxu0
  %v574 = vadd.f32 %v133, %v573
  %v575 = vpop.f32.mrb[0].mxu0
  %576 = vmatprep.mubr.f32.mxu0 0.0
  %577 = vmatmul.mubr.f32.gmra.mrb[0].mxu0 %v245
  %v578 = vpop.f32.mrb[0].mxu0
  %v579 = vadd.f32 %v133, %v578
  %v580 = vpop.f32.mrb[0].mxu0
  %581 = vmatprep.mubr.f32.mxu0 0.0
  %582 = vmatmul.mubr.f32.gmra.mrb[0].mxu0 %v248
  %v583 = vpop.f32.mrb[0].mxu0
  %v584 = vadd.f32 %v133, %v583
  %v585 = vpop.f32.mrb[0].mxu0
  %586 = vmatprep.mubr.f32.mxu0 0.0
  %587 = vmatmul.mubr.f32.gmra.mrb[0].mxu0 %v251
  %v588 = vpop.f32.mrb[0].mxu0
  %v589 = vadd.f32 %v133, %v588
  %v590 = vpop.f32.mrb[0].mxu0
  %591 = vmatprep.mubr.f32.mxu0 0.0
  %592 = vmatmul.mubr.f32.gmra.mrb[0].mxu0 %v254
  %v593 = vpop.f32.mrb[0].mxu0
  %v594 = vadd.f32 %v133, %v593
  %v595 = vpop.f32.mrb[0].mxu0
  %596 = vmatprep.mubr.f32.mxu0 0.0
  %597 = vmatmul.mubr.f32.gmra.mrb[0].mxu0 %v257
  %v598 = vpop.f32.mrb[0].mxu0
  %v599 = vadd.f32 %v133, %v598
  %v600 = vpop.f32.mrb[0].mxu0
  %601 = vmatprep.mubr.f32.mxu0 0.0
  %602 = vmatmul.mubr.f32.gmra.mrb[0].mxu0 %v260
  %v603 = vpop.f32.mrb[0].mxu0
  %v604 = vadd.f32 %v133, %v603
  %v605 = vpop.f32.mrb[0].mxu0
  %606 = vmatprep.mubr.f32.mxu0 0.0
  %607 = vmatmul.mubr.f32.gmra.mrb[0].mxu0 %v263
  %v608 = vpop.f32.mrb[0].mxu0
  %v609 = vadd.f32 %v133, %v608
  %v610 = vpop.f32.mrb[0].mxu0
  %611 = vmatprep.mubr.f32.mxu0 0.0
  %612 = vmatmul.mubr.f32.gmra.mrb[0].mxu0 %v266
  %v613 = vpop.f32.mrb[0].mxu0
  %v614 = vadd.f32 %v133, %v613
  %v615 = vpop.f32.mrb[0].mxu0
  %616 = vmatprep.mubr.f32.mxu0 0.0
  %617 = vmatmul.mubr.f32.gmra.mrb[0].mxu0 %v269
  %v618 = vpop.f32.mrb[0].mxu0
  %v619 = vadd.f32 %v133, %v618
  %v620 = vpop.f32.mrb[0].mxu0
  %621 = vmatprep.mubr.f32.mxu0 0.0
  %622 = vmatmul.mubr.f32.gmra.mrb[0].mxu0 %v272
  %v623 = vpop.f32.mrb[0].mxu0
  %v624 = vadd.f32 %v133, %v623
  %v625 = vpop.f32.mrb[0].mxu0
  %626 = vmatprep.mubr.f32.mxu0 0.0
  %627 = vmatmul.mubr.f32.gmra.mrb[0].mxu0 %v275
  %v628 = vpop.f32.mrb[0].mxu0
  %v629 = vadd.f32 %v133, %v628
  %v630 = vpop.f32.mrb[0].mxu0
  %631 = vmatprep.mubr.f32.mxu0 0.0
  %632 = vmatmul.mubr.f32.gmra.mrb[0].mxu0 %v278
  %v633 = vpop.f32.mrb[0].mxu0
  %v634 = vadd.f32 %v133, %v633
  %v635 = vpop.f32.mrb[0].mxu0
  %636 = vmatprep.mubr.f32.mxu0 0.0
  %637 = vmatmul.mubr.f32.gmra.mrb[0].mxu0 %v281
  %v638 = vpop.f32.mrb[0].mxu0
  %v639 = vadd.f32 %v133, %v638
  %v640 = vpop.f32.mrb[0].mxu0
  %641 = vmatprep.mubr.f32.mxu0 0.0
  %642 = vmatmul.mubr.f32.gmra.mrb[0].mxu0 %v284
  %v643 = vpop.f32.mrb[0].mxu0
  %v644 = vadd.f32 %v133, %v643
  %v645 = vpop.f32.mrb[0].mxu0
  %646 = vmatprep.mubr.f32.mxu0 0.0
  %647 = vmatmul.mubr.f32.gmra.mrb[0].mxu0 %v287
  %v648 = vpop.f32.mrb[0].mxu0
  %v649 = vadd.f32 %v133, %v648
  %v650 = vpop.f32.mrb[0].mxu0
  %651 = vmatprep.mubr.f32.mxu0 0.0
  %652 = vmatmul.mubr.f32.gmra.mrb[0].mxu0 %v290
  %v653 = vpop.f32.mrb[0].mxu0
  %v654 = vadd.f32 %v133, %v653
  %v655 = vpop.f32.mrb[0].mxu0
  %656 = vmatprep.mubr.f32.mxu0 0.0
  %657 = vmatmul.mubr.f32.gmra.mrb[0].mxu0 %v293
  %v658 = vpop.f32.mrb[0].mxu0
  %v659 = vadd.f32 %v133, %v658
  %v660 = vpop.f32.mrb[0].mxu0
  %661 = vmatprep.mubr.f32.mxu0 0.0
  %662 = vmatmul.mubr.f32.gmra.mrb[0].mxu0 %v296
  %v663 = vpop.f32.mrb[0].mxu0
  %v664 = vadd.f32 %v133, %v663
  %v665 = vpop.f32.mrb[0].mxu0
  %666 = vmatprep.mubr.f32.mxu0 0.0
  %667 = vmatmul.mubr.f32.gmra.mrb[0].mxu0 %v299
  %v668 = vpop.f32.mrb[0].mxu0
  %v669 = vadd.f32 %v133, %v668
  %v670 = vpop.f32.mrb[0].mxu0
  %671 = vmatprep.mubr.f32.mxu0 0.0
  %672 = vmatmul.mubr.f32.gmra.mrb[0].mxu0 %v302
  %v673 = vpop.f32.mrb[0].mxu0
  %v674 = vadd.f32 %v133, %v673
  %v675 = vpop.f32.mrb[0].mxu0
  %676 = vmatprep.mubr.f32.mxu0 0.0
  %677 = vmatmul.mubr.f32.gmra.mrb[0].mxu0 %v305
  %v678 = vpop.f32.mrb[0].mxu0
  %v679 = vadd.f32 %v133, %v678
  %v680 = vpop.f32.mrb[0].mxu0
  %681 = vmatprep.mubr.f32.mxu0 0.0
  %682 = vmatmul.mubr.f32.gmra.mrb[0].mxu0 %v308
  %v683 = vpop.f32.mrb[0].mxu0
  %v684 = vadd.f32 %v133, %v683
  %v685 = vpop.f32.mrb[0].mxu0
  %686 = vmatprep.mubr.f32.mxu0 0.0
  %687 = vmatmul.mubr.f32.gmra.mrb[0].mxu0 %v311
  %v688 = vpop.f32.mrb[0].mxu0
  %v689 = vadd.f32 %v133, %v688
  %v690 = vpop.f32.mrb[0].mxu0
  %691 = vmatprep.mubr.f32.mxu0 0.0
  %692 = vmatmul.mubr.f32.gmra.mrb[0].mxu0 %v314
  %v693 = vpop.f32.mrb[0].mxu0
  %v694 = vadd.f32 %v133, %v693
  %v695 = vpop.f32.mrb[0].mxu0
  %696 = vmatprep.mubr.f32.mxu0 0.0
  %697 = vmatmul.mubr.f32.gmra.mrb[0].mxu0 %v317
  %v698 = vpop.f32.mrb[0].mxu0
  %v699 = vadd.f32 %v133, %v698
  %v700 = vpop.f32.mrb[0].mxu0
  %701 = vmatprep.mubr.f32.mxu0 0.0
  %702 = vmatmul.mubr.f32.gmra.mrb[0].mxu0 %v320
  %v703 = vpop.f32.mrb[0].mxu0
  %v704 = vadd.f32 %v133, %v703
  %v705 = vpop.f32.mrb[0].mxu0
  %706 = vmatprep.mubr.f32.mxu0 0.0
  %707 = vmatmul.mubr.f32.gmra.mrb[0].mxu0 %v323
  %v708 = vpop.f32.mrb[0].mxu0
  %v709 = vadd.f32 %v133, %v708
  %v710 = vpop.f32.mrb[0].mxu0
  %711 = vmatprep.mubr.f32.mxu0 0.0
  %712 = vmatmul.mubr.f32.gmra.mrb[0].mxu0 %v326
  %v713 = vpop.f32.mrb[0].mxu0
  %v714 = vadd.f32 %v133, %v713
  %v715 = vpop.f32.mrb[0].mxu0
  %716 = vdwg.mxu0
  %v717 = vmax.f32 %v399, 0.0
  %v718 = vmax.f32 %v404, 0.0
  %v719 = vmax.f32 %v409, 0.0
  %v720 = vmax.f32 %v414, 0.0
  %v721 = vmax.f32 %v419, 0.0
  %v722 = vmax.f32 %v424, 0.0
  %v723 = vmax.f32 %v429, 0.0
  %v724 = vmax.f32 %v434, 0.0
  %v725 = vmax.f32 %v439, 0.0
  %v726 = vmax.f32 %v444, 0.0
  %v727 = vmax.f32 %v449, 0.0
  %v728 = vmax.f32 %v454, 0.0
  %v729 = vmax.f32 %v459, 0.0
  %v730 = vmax.f32 %v464, 0.0
  %v731 = vmax.f32 %v469, 0.0
  %v732 = vmax.f32 %v474, 0.0
  %v733 = vmax.f32 %v479, 0.0
  %v734 = vmax.f32 %v484, 0.0
  %v735 = vmax.f32 %v489, 0.0
  %v736 = vmax.f32 %v494, 0.0
  %v737 = vmax.f32 %v499, 0.0
  %v738 = vmax.f32 %v504, 0.0
  %v739 = vmax.f32 %v509, 0.0
  %v740 = vmax.f32 %v514, 0.0
  %v741 = vmax.f32 %v519, 0.0
  %v742 = vmax.f32 %v524, 0.0
  %v743 = vmax.f32 %v529, 0.0
  %v744 = vmax.f32 %v534, 0.0
  %v745 = vmax.f32 %v539, 0.0
  %v746 = vmax.f32 %v544, 0.0
  %v747 = vmax.f32 %v549, 0.0
  %v748 = vmax.f32 %v554, 0.0
  %v749 = vmax.f32 %v559, 0.0
  %v750 = vmax.f32 %v564, 0.0
  %v751 = vmax.f32 %v569, 0.0
  %v752 = vmax.f32 %v574, 0.0
  %v753 = vmax.f32 %v579, 0.0
  %v754 = vmax.f32 %v584, 0.0
  %v755 = vmax.f32 %v589, 0.0
  %v756 = vmax.f32 %v594, 0.0
  %v757 = vmax.f32 %v599, 0.0
  %v758 = vmax.f32 %v604, 0.0
  %v759 = vmax.f32 %v609, 0.0
  %v760 = vmax.f32 %v614, 0.0
  %v761 = vmax.f32 %v619, 0.0
  %v762 = vmax.f32 %v624, 0.0
  %v763 = vmax.f32 %v629, 0.0
  %v764 = vmax.f32 %v634, 0.0
  %v765 = vmax.f32 %v639, 0.0
  %v766 = vmax.f32 %v644, 0.0
  %v767 = vmax.f32 %v649, 0.0
  %v768 = vmax.f32 %v654, 0.0
  %v769 = vmax.f32 %v659, 0.0
  %v770 = vmax.f32 %v664, 0.0
  %v771 = vmax.f32 %v669, 0.0
  %v772 = vmax.f32 %v674, 0.0
  %v773 = vmax.f32 %v679, 0.0
  %v774 = vmax.f32 %v684, 0.0
  %v775 = vmax.f32 %v689, 0.0
  %v776 = vmax.f32 %v694, 0.0
  %v777 = vmax.f32 %v699, 0.0
  %v778 = vmax.f32 %v704, 0.0
  %v779 = vmax.f32 %v709, 0.0
  %v780 = vmax.f32 %v714, 0.0
  %vm781 = vcmask 261120
  %v782 = vsel %vm781, %v717, 0.0
  %v783 = vsel %vm781, %v718, 0.0
  %v784 = vadd.f32 %v782, %v783
  %v785 = vsel %vm781, %v719, 0.0
  %v786 = vadd.f32 %v784, %v785
  %v787 = vsel %vm781, %v720, 0.0
  %v788 = vadd.f32 %v786, %v787
  %v789 = vsel %vm781, %v721, 0.0
  %v790 = vadd.f32 %v788, %v789
  %v791 = vsel %vm781, %v722, 0.0
  %v792 = vadd.f32 %v790, %v791
  %v793 = vsel %vm781, %v723, 0.0
  %v794 = vadd.f32 %v792, %v793
  %v795 = vsel %vm781, %v724, 0.0
  %v796 = vadd.f32 %v794, %v795
  %v797 = vsel %vm781, %v725, 0.0
  %v798 = vadd.f32 %v796, %v797
  %v799 = vsel %vm781, %v726, 0.0
  %v800 = vadd.f32 %v798, %v799
  %v801 = vsel %vm781, %v727, 0.0
  %v802 = vadd.f32 %v800, %v801
  %v803 = vsel %vm781, %v728, 0.0
  %v804 = vadd.f32 %v802, %v803
  %v805 = vsel %vm781, %v729, 0.0
  %v806 = vadd.f32 %v804, %v805
  %v807 = vsel %vm781, %v730, 0.0
  %v808 = vadd.f32 %v806, %v807
  %v809 = vsel %vm781, %v731, 0.0
  %v810 = vadd.f32 %v808, %v809
  %v811 = vsel %vm781, %v732, 0.0
  %v812 = vadd.f32 %v810, %v811
  %v813 = vsel %vm781, %v733, 0.0
  %v814 = vadd.f32 %v812, %v813
  %v815 = vsel %vm781, %v734, 0.0
  %v816 = vadd.f32 %v814, %v815
  %v817 = vsel %vm781, %v735, 0.0
  %v818 = vadd.f32 %v816, %v817
  %v819 = vsel %vm781, %v736, 0.0
  %v820 = vadd.f32 %v818, %v819
  %v821 = vsel %vm781, %v737, 0.0
  %v822 = vadd.f32 %v820, %v821
  %v823 = vsel %vm781, %v738, 0.0
  %v824 = vadd.f32 %v822, %v823
  %v825 = vsel %vm781, %v739, 0.0
  %v826 = vadd.f32 %v824, %v825
  %v827 = vsel %vm781, %v740, 0.0
  %v828 = vadd.f32 %v826, %v827
  %v829 = vsel %vm781, %v741, 0.0
  %v830 = vadd.f32 %v828, %v829
  %v831 = vsel %vm781, %v742, 0.0
  %v832 = vadd.f32 %v830, %v831
  %v833 = vsel %vm781, %v743, 0.0
  %v834 = vadd.f32 %v832, %v833
  %v835 = vsel %vm781, %v744, 0.0
  %v836 = vadd.f32 %v834, %v835
  %v837 = vsel %vm781, %v745, 0.0
  %v838 = vadd.f32 %v836, %v837
  %v839 = vsel %vm781, %v746, 0.0
  %v840 = vadd.f32 %v838, %v839
  %v841 = vsel %vm781, %v747, 0.0
  %v842 = vadd.f32 %v840, %v841
  %v843 = vsel %vm781, %v748, 0.0
  %v844 = vadd.f32 %v842, %v843
  %v845 = vrot.slane %v844, 4
  %v846 = vadd.f32 %v844, %v845
  %v847 = vrot.slane %v846, 2
  %v848 = vadd.f32 %v846, %v847
  %v849 = vrot.slane %v848, 1
  %v850 = vadd.f32 %v848, %v849
  %v851 = vsel %vm781, %v749, 0.0
  %v852 = vsel %vm781, %v750, 0.0
  %v853 = vadd.f32 %v851, %v852
  %v854 = vsel %vm781, %v751, 0.0
  %v855 = vadd.f32 %v853, %v854
  %v856 = vsel %vm781, %v752, 0.0
  %v857 = vadd.f32 %v855, %v856
  %v858 = vsel %vm781, %v753, 0.0
  %v859 = vadd.f32 %v857, %v858
  %v860 = vsel %vm781, %v754, 0.0
  %v861 = vadd.f32 %v859, %v860
  %v862 = vsel %vm781, %v755, 0.0
  %v863 = vadd.f32 %v861, %v862
  %v864 = vsel %vm781, %v756, 0.0
  %v865 = vadd.f32 %v863, %v864
  %v866 = vsel %vm781, %v757, 0.0
  %v867 = vadd.f32 %v865, %v866
  %v868 = vsel %vm781, %v758, 0.0
  %v869 = vadd.f32 %v867, %v868
  %v870 = vsel %vm781, %v759, 0.0
  %v871 = vadd.f32 %v869, %v870
  %v872 = vsel %vm781, %v760, 0.0
  %v873 = vadd.f32 %v871, %v872
  %v874 = vsel %vm781, %v761, 0.0
  %v875 = vadd.f32 %v873, %v874
  %v876 = vsel %vm781, %v762, 0.0
  %v877 = vadd.f32 %v875, %v876
  %v878 = vsel %vm781, %v763, 0.0
  %v879 = vadd.f32 %v877, %v878
  %v880 = vsel %vm781, %v764, 0.0
  %v881 = vadd.f32 %v879, %v880
  %v882 = vsel %vm781, %v765, 0.0
  %v883 = vadd.f32 %v881, %v882
  %v884 = vsel %vm781, %v766, 0.0
  %v885 = vadd.f32 %v883, %v884
  %v886 = vsel %vm781, %v767, 0.0
  %v887 = vadd.f32 %v885, %v886
  %v888 = vsel %vm781, %v768, 0.0
  %v889 = vadd.f32 %v887, %v888
  %v890 = vsel %vm781, %v769, 0.0
  %v891 = vadd.f32 %v889, %v890
  %v892 = vsel %vm781, %v770, 0.0
  %v893 = vadd.f32 %v891, %v892
  %v894 = vsel %vm781, %v771, 0.0
  %v895 = vadd.f32 %v893, %v894
  %v896 = vsel %vm781, %v772, 0.0
  %v897 = vadd.f32 %v895, %v896
  %v898 = vsel %vm781, %v773, 0.0
  %v899 = vadd.f32 %v897, %v898
  %v900 = vsel %vm781, %v774, 0.0
  %v901 = vadd.f32 %v899, %v900
  %v902 = vsel %vm781, %v775, 0.0
  %v903 = vadd.f32 %v901, %v902
  %v904 = vsel %vm781, %v776, 0.0
  %v905 = vadd.f32 %v903, %v904
  %v906 = vsel %vm781, %v777, 0.0
  %v907 = vadd.f32 %v905, %v906
  %v908 = vsel %vm781, %v778, 0.0
  %v909 = vadd.f32 %v907, %v908
  %v910 = vsel %vm781, %v779, 0.0
  %v911 = vadd.f32 %v909, %v910
  %v912 = vsel %vm781, %v780, 0.0
  %v913 = vadd.f32 %v911, %v912
  %v914 = vrot.slane %v913, 4
  %v915 = vadd.f32 %v913, %v914
  %v916 = vrot.slane %v915, 2
  %v917 = vadd.f32 %v915, %v916
  %v918 = vrot.slane %v917, 1
  %v919 = vadd.f32 %v917, %v918
  %vm920 = vcmask 1040384
  %v921 = vsel %vm920, %v850, %v919
  %v922 = vmul.f32 %v921, 0.00390625
  %v924 = vlaneseq
  %v925 = vshrl.u32 %v924, 7
  %v926 = vsub.s32 0, %v925
  %v927 = vrot.slane %v55, %v926
  %v930 = vsel %vm781, %v922, 0
  %932 = vmatprep.subr.mxu0 0.0
  %933 = vmatpush1.msra.mxu0 %v51
  %934 = vmatprep.subr.mxu0 0.0
  %935 = vmatpush1.msra.mxu0 %v52
  %936 = vmatprep.subr.mxu0 0.0
  %937 = vmatpush1.msra.mxu0 %v53
  %938 = vmatprep.subr.mxu0 0.0
  %939 = vmatpush1.msra.mxu0 %v54
  %940 = vmatprep.subr.mxu0 0.0
  %941 = vmatpush1.msra.mxu0 0.0
  %942 = vmatprep.subr.mxu0 0.0
  %943 = vmatpush1.msra.mxu0 0.0
  %944 = vmatprep.subr.mxu0 0.0
  %945 = vmatpush1.msra.mxu0 0.0
  %946 = vmatprep.subr.mxu0 0.0
  %947 = vmatpush1.msra.mxu0 0.0
  %948 = vmatprep.subr.mxu0 0.0
  %949 = vmatpush1.msra.mxu0 0.0
  %950 = vmatprep.subr.mxu0 0.0
  %951 = vmatpush1.msra.mxu0 0.0
  %952 = vmatprep.subr.mxu0 0.0
  %953 = vmatpush1.msra.mxu0 0.0
  %954 = vmatprep.subr.mxu0 0.0
  %955 = vmatpush1.msra.mxu0 0.0
  %956 = vmatprep.subr.mxu0 0.0
  %957 = vmatpush1.msra.mxu0 0.0
  %958 = vmatprep.subr.mxu0 0.0
  %959 = vmatpush1.msra.mxu0 0.0
  %960 = vmatprep.subr.mxu0 0.0
  %961 = vmatpush1.msra.mxu0 0.0
  %962 = vmatprep.subr.mxu0 0.0
  %963 = vmatpush1.msra.mxu0 0.0
  %964 = vmatprep.subr.mxu0 0.0
  %965 = vmatpush1.msra.mxu0 0.0
  %966 = vmatprep.subr.mxu0 0.0
  %967 = vmatpush1.msra.mxu0 0.0
  %968 = vmatprep.subr.mxu0 0.0
  %969 = vmatpush1.msra.mxu0 0.0
  %970 = vmatprep.subr.mxu0 0.0
  %971 = vmatpush1.msra.mxu0 0.0
  %972 = vmatprep.subr.mxu0 0.0
  %973 = vmatpush1.msra.mxu0 0.0
  %974 = vmatprep.subr.mxu0 0.0
  %975 = vmatpush1.msra.mxu0 0.0
  %976 = vmatprep.subr.mxu0 0.0
  %977 = vmatpush1.msra.mxu0 0.0
  %978 = vmatprep.subr.mxu0 0.0
  %979 = vmatpush1.msra.mxu0 0.0
  %980 = vmatprep.subr.mxu0 0.0
  %981 = vmatpush1.msra.mxu0 0.0
  %982 = vmatprep.subr.mxu0 0.0
  %983 = vmatpush1.msra.mxu0 0.0
  %984 = vmatprep.subr.mxu0 0.0
  %985 = vmatpush1.msra.mxu0 0.0
  %986 = vmatprep.subr.mxu0 0.0
  %987 = vmatpush1.msra.mxu0 0.0
  %988 = vmatprep.subr.mxu0 0.0
  %989 = vmatpush1.msra.mxu0 0.0
  %990 = vmatprep.subr.mxu0 0.0
  %991 = vmatpush1.msra.mxu0 0.0
  %992 = vmatprep.subr.mxu0 0.0
  %993 = vmatpush1.msra.mxu0 0.0
  %994 = vmatprep.subr.mxu0 0.0
  %995 = vmatpush1.msra.mxu0 0.0
  %996 = vmatprep.mubr.f32.mxu0 0.0
  %997 = vmatmul.mubr.f32.gmra.mrb[0].mxu0 %v930
  %v998 = vpop.f32.mrb[0].mxu0
  %v999 = vadd.f32 %v927, %v998
  %v1000 = vpop.f32.mrb[0].mxu0
  %1001 = vdwg.mxu0
  %vm1002 = vcmask 254976
  %v1003 = vsel %vm1002, %v999, 0.0
  %v1004 = vrot.slane %v1003, 4
  %v1005 = vadd.f32 %v1003, %v1004
  %v1006 = vrot.slane %v1005, 2
  %v1007 = vadd.f32 %v1005, %v1006
  %v1008 = vrot.slane %v1007, 1
  %v1009 = vadd.f32 %v1007, %v1008
  %v1010 = vrcp.pop 2.0
  %v1011 = vmul.f32 %v1009, %v1010
  %v1012 = vsub.f32 %v999, %v1011
  %v1013 = vmul.f32 %v1012, %v1012
  %v1014 = vsel %vm1002, %v1013, 0.0
  %v1015 = vrot.slane %v1014, 4
  %v1016 = vadd.f32 %v1014, %v1015
  %v1017 = vrot.slane %v1016, 2
  %v1018 = vadd.f32 %v1016, %v1017
  %v1019 = vrot.slane %v1018, 1
  %v1020 = vadd.f32 %v1018, %v1019
  %v1021 = vmul.f32 %v1020, %v1010
  %v1022 = vadd.f32 %v1021, 1e-05
  %v1023 = vrsqrt.pop %v1022
  %v1024 = vmul.f32 %v1012, %v1023
  %v1026 = vlaneseq
  %v1027 = vshrl.u32 %v1026, 7
  %v1028 = vsub.s32 0, %v1027
  %v1029 = vrot.slane %v56, %v1028
  %v1031 = vmul.f32 %v1024, %v1029
  %v1033 = vlaneseq
  %v1034 = vshrl.u32 %v1033, 7
  %v1035 = vsub.s32 0, %v1034
  %v1036 = vrot.slane %v57, %v1035
  %v1038 = vadd.f32 %v1031, %v1036
  %v1039 = vmax.f32 %v1038, 0.0
  %v1041 = vlaneseq
  %v1042 = vshrl.u32 %v1041, 7
  %v1043 = vsub.s32 0, %v1042
  %v1044 = vrot.slane %v62, %v1043
  %v1047 = vsel %vm781, %v1039, 0
  %1049 = vmatprep.subr.mxu0 0.0
  %1050 = vmatpush1.msra.mxu0 %v58
  %1051 = vmatprep.subr.mxu0 0.0
  %1052 = vmatpush1.msra.mxu0 %v59
  %1053 = vmatprep.subr.mxu0 0.0
  %1054 = vmatpush1.msra.mxu0 %v60
  %1055 = vmatprep.subr.mxu0 0.0
  %1056 = vmatpush1.msra.mxu0 %v61
  %1057 = vmatprep.subr.mxu0 0.0
  %1058 = vmatpush1.msra.mxu0 0.0
  %1059 = vmatprep.subr.mxu0 0.0
  %1060 = vmatpush1.msra.mxu0 0.0
  %1061 = vmatprep.subr.mxu0 0.0
  %1062 = vmatpush1.msra.mxu0 0.0
  %1063 = vmatprep.subr.mxu0 0.0
  %1064 = vmatpush1.msra.mxu0 0.0
  %1065 = vmatprep.subr.mxu0 0.0
  %1066 = vmatpush1.msra.mxu0 0.0
  %1067 = vmatprep.subr.mxu0 0.0
  %1068 = vmatpush1.msra.mxu0 0.0
  %1069 = vmatprep.subr.mxu0 0.0
  %1070 = vmatpush1.msra.mxu0 0.0
  %1071 = vmatprep.subr.mxu0 0.0
  %1072 = vmatpush1.msra.mxu0 0.0
  %1073 = vmatprep.subr.mxu0 0.0
  %1074 = vmatpush1.msra.mxu0 0.0
  %1075 = vmatprep.subr.mxu0 0.0
  %1076 = vmatpush1.msra.mxu0 0.0
  %1077 = vmatprep.subr.mxu0 0.0
  %1078 = vmatpush1.msra.mxu0 0.0
  %1079 = vmatprep.subr.mxu0 0.0
  %1080 = vmatpush1.msra.mxu0 0.0
  %1081 = vmatprep.subr.mxu0 0.0
  %1082 = vmatpush1.msra.mxu0 0.0
  %1083 = vmatprep.subr.mxu0 0.0
  %1084 = vmatpush1.msra.mxu0 0.0
  %1085 = vmatprep.subr.mxu0 0.0
  %1086 = vmatpush1.msra.mxu0 0.0
  %1087 = vmatprep.subr.mxu0 0.0
  %1088 = vmatpush1.msra.mxu0 0.0
  %1089 = vmatprep.subr.mxu0 0.0
  %1090 = vmatpush1.msra.mxu0 0.0
  %1091 = vmatprep.subr.mxu0 0.0
  %1092 = vmatpush1.msra.mxu0 0.0
  %1093 = vmatprep.subr.mxu0 0.0
  %1094 = vmatpush1.msra.mxu0 0.0
  %1095 = vmatprep.subr.mxu0 0.0
  %1096 = vmatpush1.msra.mxu0 0.0
  %1097 = vmatprep.subr.mxu0 0.0
  %1098 = vmatpush1.msra.mxu0 0.0
  %1099 = vmatprep.subr.mxu0 0.0
  %1100 = vmatpush1.msra.mxu0 0.0
  %1101 = vmatprep.subr.mxu0 0.0
  %1102 = vmatpush1.msra.mxu0 0.0
  %1103 = vmatprep.subr.mxu0 0.0
  %1104 = vmatpush1.msra.mxu0 0.0
  %1105 = vmatprep.subr.mxu0 0.0
  %1106 = vmatpush1.msra.mxu0 0.0
  %1107 = vmatprep.subr.mxu0 0.0
  %1108 = vmatpush1.msra.mxu0 0.0
  %1109 = vmatprep.subr.mxu0 0.0
  %1110 = vmatpush1.msra.mxu0 0.0
  %1111 = vmatprep.subr.mxu0 0.0
  %1112 = vmatpush1.msra.mxu0 0.0
  %1113 = vmatprep.mubr.f32.mxu0 0.0
  %1114 = vmatmul.mubr.f32.gmra.mrb[0].mxu0 %v1047
  %v1115 = vpop.f32.mrb[0].mxu0
  %v1116 = vadd.f32 %v1044, %v1115
  %v1117 = vpop.f32.mrb[0].mxu0
  %1118 = vdwg.mxu0
  %v1119 = vmul.f32 %v1116, %v1116
  %vm1120 = vcmask 123904
  %v1121 = vsel %vm1120, %v1119, 0.0
  %1122 = vadd.xlane.f32.xlu0 %v1121
  %v1123 = vpop.xlane.xlu0 %1122
  %v1124 = vmax.f32 %v1123, 1e-24
  %v1125 = vrsqrt.pop %v1124
  %v1126 = vmul.f32 %v1116, %v1125
  %vm1127 = vcmask 130048
  %v1129 = vsel %vm1127, %v1126, 0
  %1131 = vmatprep.subr.mxu0 0.0
  %1132 = vmatpush1.msra.mxu0 %v63
  %1133 = vmatprep.subr.mxu0 0.0
  %1134 = vmatpush1.msra.mxu0 %v64
  %1135 = vmatprep.subr.mxu0 0.0
  %1136 = vmatpush1.msra.mxu0 0.0
  %1137 = vmatprep.subr.mxu0 0.0
  %1138 = vmatpush1.msra.mxu0 0.0
  %1139 = vmatprep.subr.mxu0 0.0
  %1140 = vmatpush1.msra.mxu0 0.0
  %1141 = vmatprep.subr.mxu0 0.0
  %1142 = vmatpush1.msra.mxu0 0.0
  %1143 = vmatprep.subr.mxu0 0.0
  %1144 = vmatpush1.msra.mxu0 0.0
  %1145 = vmatprep.subr.mxu0 0.0
  %1146 = vmatpush1.msra.mxu0 0.0
  %1147 = vmatprep.subr.mxu0 0.0
  %1148 = vmatpush1.msra.mxu0 0.0
  %1149 = vmatprep.subr.mxu0 0.0
  %1150 = vmatpush1.msra.mxu0 0.0
  %1151 = vmatprep.subr.mxu0 0.0
  %1152 = vmatpush1.msra.mxu0 0.0
  %1153 = vmatprep.subr.mxu0 0.0
  %1154 = vmatpush1.msra.mxu0 0.0
  %1155 = vmatprep.subr.mxu0 0.0
  %1156 = vmatpush1.msra.mxu0 0.0
  %1157 = vmatprep.subr.mxu0 0.0
  %1158 = vmatpush1.msra.mxu0 0.0
  %1159 = vmatprep.subr.mxu0 0.0
  %1160 = vmatpush1.msra.mxu0 0.0
  %1161 = vmatprep.subr.mxu0 0.0
  %1162 = vmatpush1.msra.mxu0 0.0
  %1163 = vmatprep.subr.mxu0 0.0
  %1164 = vmatpush1.msra.mxu0 0.0
  %1165 = vmatprep.subr.mxu0 0.0
  %1166 = vmatpush1.msra.mxu0 0.0
  %1167 = vmatprep.subr.mxu0 0.0
  %1168 = vmatpush1.msra.mxu0 0.0
  %1169 = vmatprep.subr.mxu0 0.0
  %1170 = vmatpush1.msra.mxu0 0.0
  %1171 = vmatprep.subr.mxu0 0.0
  %1172 = vmatpush1.msra.mxu0 0.0
  %1173 = vmatprep.subr.mxu0 0.0
  %1174 = vmatpush1.msra.mxu0 0.0
  %1175 = vmatprep.subr.mxu0 0.0
  %1176 = vmatpush1.msra.mxu0 0.0
  %1177 = vmatprep.subr.mxu0 0.0
  %1178 = vmatpush1.msra.mxu0 0.0
  %1179 = vmatprep.subr.mxu0 0.0
  %1180 = vmatpush1.msra.mxu0 0.0
  %1181 = vmatprep.subr.mxu0 0.0
  %1182 = vmatpush1.msra.mxu0 0.0
  %1183 = vmatprep.subr.mxu0 0.0
  %1184 = vmatpush1.msra.mxu0 0.0
  %1185 = vmatprep.subr.mxu0 0.0
  %1186 = vmatpush1.msra.mxu0 0.0
  %1187 = vmatprep.subr.mxu0 0.0
  %1188 = vmatpush1.msra.mxu0 0.0
  %1189 = vmatprep.subr.mxu0 0.0
  %1190 = vmatpush1.msra.mxu0 0.0
  %1191 = vmatprep.subr.mxu0 0.0
  %1192 = vmatpush1.msra.mxu0 0.0
  %1193 = vmatprep.subr.mxu0 0.0
  %1194 = vmatpush1.msra.mxu0 0.0
  %1195 = vmatprep.mubr.f32.mxu0 0.0
  %1196 = vmatmul.mubr.f32.gmra.mrb[0].mxu0 %v1129
  %v1197 = vpop.f32.mrb[0].mxu0
  %v1198 = vadd.f32 0.0, %v1197
  %v1199 = vpop.f32.mrb[0].mxu0
  %1200 = vdwg.mxu0
  %1201 = vst.msk [vmem:[%s12] sm:$0x3] %vm1120, %v1126
  %vm1202 = vcmask 517120
  %1203 = vst.msk [vmem:[%s13] sm:$0x3] %vm1202, %v1198
  %v1204 = vmul.f32 %v1198, 20.0
  %v1205 = vmul.f32 %v1204, 1.442695
  %v1206 = vpow.pop %v1205
  %v1207 = vld [vmem:[%s11] sm:$0xff]
  %v1208 = vld [vmem:[%s11 + $0x8] sm:$0xff]
  %v1210 = vsel %vm1127, %v1207, 0
  %v1213 = vsel %vm1127, %v1208, 0
  %1215 = vmatprep.subr.mxu0 0.0
  %1216 = vmatpush1.msra.mxu0 %v63
  %1217 = vmatprep.subr.mxu0 0.0
  %1218 = vmatpush1.msra.mxu0 %v64
  %1219 = vmatprep.subr.mxu0 0.0
  %1220 = vmatpush1.msra.mxu0 0.0
  %1221 = vmatprep.subr.mxu0 0.0
  %1222 = vmatpush1.msra.mxu0 0.0
  %1223 = vmatprep.subr.mxu0 0.0
  %1224 = vmatpush1.msra.mxu0 0.0
  %1225 = vmatprep.subr.mxu0 0.0
  %1226 = vmatpush1.msra.mxu0 0.0
  %1227 = vmatprep.subr.mxu0 0.0
  %1228 = vmatpush1.msra.mxu0 0.0
  %1229 = vmatprep.subr.mxu0 0.0
  %1230 = vmatpush1.msra.mxu0 0.0
  %1231 = vmatprep.subr.mxu0 0.0
  %1232 = vmatpush1.msra.mxu0 0.0
  %1233 = vmatprep.subr.mxu0 0.0
  %1234 = vmatpush1.msra.mxu0 0.0
  %1235 = vmatprep.subr.mxu0 0.0
  %1236 = vmatpush1.msra.mxu0 0.0
  %1237 = vmatprep.subr.mxu0 0.0
  %1238 = vmatpush1.msra.mxu0 0.0
  %1239 = vmatprep.subr.mxu0 0.0
  %1240 = vmatpush1.msra.mxu0 0.0
  %1241 = vmatprep.subr.mxu0 0.0
  %1242 = vmatpush1.msra.mxu0 0.0
  %1243 = vmatprep.subr.mxu0 0.0
  %1244 = vmatpush1.msra.mxu0 0.0
  %1245 = vmatprep.subr.mxu0 0.0
  %1246 = vmatpush1.msra.mxu0 0.0
  %1247 = vmatprep.subr.mxu0 0.0
  %1248 = vmatpush1.msra.mxu0 0.0
  %1249 = vmatprep.subr.mxu0 0.0
  %1250 = vmatpush1.msra.mxu0 0.0
  %1251 = vmatprep.subr.mxu0 0.0
  %1252 = vmatpush1.msra.mxu0 0.0
  %1253 = vmatprep.subr.mxu0 0.0
  %1254 = vmatpush1.msra.mxu0 0.0
  %1255 = vmatprep.subr.mxu0 0.0
  %1256 = vmatpush1.msra.mxu0 0.0
  %1257 = vmatprep.subr.mxu0 0.0
  %1258 = vmatpush1.msra.mxu0 0.0
  %1259 = vmatprep.subr.mxu0 0.0
  %1260 = vmatpush1.msra.mxu0 0.0
  %1261 = vmatprep.subr.mxu0 0.0
  %1262 = vmatpush1.msra.mxu0 0.0
  %1263 = vmatprep.subr.mxu0 0.0
  %1264 = vmatpush1.msra.mxu0 0.0
  %1265 = vmatprep.subr.mxu0 0.0
  %1266 = vmatpush1.msra.mxu0 0.0
  %1267 = vmatprep.subr.mxu0 0.0
  %1268 = vmatpush1.msra.mxu0 0.0
  %1269 = vmatprep.subr.mxu0 0.0
  %1270 = vmatpush1.msra.mxu0 0.0
  %1271 = vmatprep.subr.mxu0 0.0
  %1272 = vmatpush1.msra.mxu0 0.0
  %1273 = vmatprep.subr.mxu0 0.0
  %1274 = vmatpush1.msra.mxu0 0.0
  %1275 = vmatprep.subr.mxu0 0.0
  %1276 = vmatpush1.msra.mxu0 0.0
  %1277 = vmatprep.subr.mxu0 0.0
  %1278 = vmatpush1.msra.mxu0 0.0
  %1279 = vmatprep.mubr.f32.mxu0 0.0
  %1280 = vmatmul.mubr.f32.gmra.mrb[0].mxu0 %v1210
  %v1281 = vpop.f32.mrb[0].mxu0
  %v1282 = vadd.f32 0.0, %v1281
  %v1283 = vpop.f32.mrb[0].mxu0
  %1284 = vmatprep.mubr.f32.mxu0 0.0
  %1285 = vmatmul.mubr.f32.gmra.mrb[0].mxu0 %v1213
  %v1286 = vpop.f32.mrb[0].mxu0
  %v1287 = vadd.f32 0.0, %v1286
  %v1288 = vpop.f32.mrb[0].mxu0
  %1289 = vdwg.mxu0
  %v1290 = vmul.f32 %v1282, 20.0
  %v1291 = vmul.f32 %v1287, 20.0
  %v1292 = vmul.f32 %v1290, 1.442695
  %v1293 = vpow.pop %v1292
  %v1294 = vmul.f32 %v1291, 1.442695
  %v1295 = vpow.pop %v1294
  %vm1296 = vcmask 523264
  %v1297 = vsel %vm1296, %v1293, 0.0
  %1298 = vadd.xlane.f32.xlu0 %v1297
  %v1299 = vpop.xlane.xlu0 %1298
  %v1300 = vsel %vm1296, %v1295, 0.0
  %1301 = vadd.xlane.f32.xlu0 %v1300
  %v1302 = vpop.xlane.xlu0 %1301
  %v1303 = vrot.slane %v1299, 4
  %v1304 = vadd.f32 %v1299, %v1303
  %v1305 = vrot.slane %v1304, 2
  %v1306 = vadd.f32 %v1304, %v1305
  %v1307 = vrot.slane %v1306, 1
  %v1308 = vadd.f32 %v1306, %v1307
  %v1309 = vrot.slane %v1302, 4
  %v1310 = vadd.f32 %v1302, %v1309
  %v1311 = vrot.slane %v1310, 2
  %v1312 = vadd.f32 %v1310, %v1311
  %v1313 = vrot.slane %v1312, 1
  %v1314 = vadd.f32 %v1312, %v1313
  %v1315 = vsel %vm1202, %v1206, 0.0
  %1316 = vadd.xlane.f32.xlu0 %v1315
  %v1317 = vpop.xlane.xlu0 %1316
  %vm1318 = vcmask 1041408
  %v1319 = vsel %vm1318, %v1317, 0.0
  %v1320 = vrot.slane %v1319, 4
  %v1321 = vadd.f32 %v1319, %v1320
  %v1322 = vrot.slane %v1321, 2
  %v1323 = vadd.f32 %v1321, %v1322
  %v1324 = vrot.slane %v1323, 1
  %v1325 = vadd.f32 %v1323, %v1324
  %v1326 = vadd.f32 %v1308, %v1325
  %v1327 = vadd.f32 %v1314, %v1325
  %v1328 = vrcp.pop %v1326
  %v1329 = vrcp.pop %v1327
  %v1330 = vmul.f32 %v1293, %v1328
  %v1331 = vmul.f32 %v1295, %v1329
  %v1332 = vmul.f32 %v1206, %v1328
  %v1333 = vmul.f32 %v1206, %v1329
  %v1334 = vsel %vm1296, %v1330, 0.0
  %v1335 = vrot.slane %v1334, 4
  %v1336 = vadd.f32 %v1334, %v1335
  %v1337 = vrot.slane %v1336, 2
  %v1338 = vadd.f32 %v1336, %v1337
  %v1339 = vrot.slane %v1338, 1
  %v1340 = vadd.f32 %v1338, %v1339
  %v1341 = vsel %vm1296, %v1331, 0.0
  %v1342 = vrot.slane %v1341, 4
  %v1343 = vadd.f32 %v1341, %v1342
  %v1344 = vrot.slane %v1343, 2
  %v1345 = vadd.f32 %v1343, %v1344
  %v1346 = vrot.slane %v1345, 1
  %v1347 = vadd.f32 %v1345, %v1346
  %v1348 = vsel %vm1202, %v1332, 0.0
  %v1349 = vrot.slane %v1348, 4
  %v1350 = vadd.f32 %v1348, %v1349
  %v1351 = vrot.slane %v1350, 2
  %v1352 = vadd.f32 %v1350, %v1351
  %v1353 = vrot.slane %v1352, 1
  %v1354 = vadd.f32 %v1352, %v1353
  %v1355 = vsel %vm1202, %v1333, 0.0
  %v1356 = vrot.slane %v1355, 4
  %v1357 = vadd.f32 %v1355, %v1356
  %v1358 = vrot.slane %v1357, 2
  %v1359 = vadd.f32 %v1357, %v1358
  %v1360 = vrot.slane %v1359, 1
  %v1361 = vadd.f32 %v1359, %v1360
  %v1362 = vadd.f32 %v1340, %v1354
  %v1363 = vadd.f32 %v1347, %v1361
  %v1364 = vmul.f32 %v1362, 64.0
  %v1365 = vmul.f32 %v1363, 64.0
  %v1366 = vrcp.pop %v1364
  %v1367 = vrcp.pop %v1365
  %v1368 = vmul.f32 %v1330, %v1366
  %v1369 = vmul.f32 %v1331, %v1367
  %v1370 = vmul.f32 %v1332, %v1366
  %v1371 = vmul.f32 %v1333, %v1367
  %v1372 = vsel %vm1296, %v1368, 0.0
  %1373 = vadd.xlane.f32.xlu0 %v1372
  %v1374 = vpop.xlane.xlu0 %1373
  %v1375 = vsel %vm1296, %v1369, 0.0
  %1376 = vadd.xlane.f32.xlu0 %v1375
  %v1377 = vpop.xlane.xlu0 %1376
  %v1378 = vmul.f32 %v1374, 10.0
  %v1379 = vmul.f32 %v1377, 10.0
  %v1380 = vrcp.pop %v1378
  %v1381 = vrcp.pop %v1379
  %v1382 = vmul.f32 %v1368, %v1380
  %v1383 = vmul.f32 %v1369, %v1381
  %v1384 = vsel %vm1202, %v1370, 0.0
  %1385 = vadd.xlane.f32.xlu0 %v1384
  %v1386 = vpop.xlane.xlu0 %1385
  %v1387 = vsel %vm1202, %v1371, 0.0
  %1388 = vadd.xlane.f32.xlu0 %v1387
  %v1389 = vpop.xlane.xlu0 %1388
  %v1390 = vmul.f32 %v1386, 10.0
  %v1391 = vmul.f32 %v1389, 10.0
  %v1392 = vrcp.pop %v1390
  %v1393 = vrcp.pop %v1391
  %v1394 = vmul.f32 %v1370, %v1392
  %v1395 = vmul.f32 %v1371, %v1393
  %v1396 = vsel %vm1296, %v1382, 0.0
  %v1397 = vrot.slane %v1396, 4
  %v1398 = vadd.f32 %v1396, %v1397
  %v1399 = vrot.slane %v1398, 2
  %v1400 = vadd.f32 %v1398, %v1399
  %v1401 = vrot.slane %v1400, 1
  %v1402 = vadd.f32 %v1400, %v1401
  %v1403 = vsel %vm1296, %v1383, 0.0
  %v1404 = vrot.slane %v1403, 4
  %v1405 = vadd.f32 %v1403, %v1404
  %v1406 = vrot.slane %v1405, 2
  %v1407 = vadd.f32 %v1405, %v1406
  %v1408 = vrot.slane %v1407, 1
  %v1409 = vadd.f32 %v1407, %v1408
  %v1410 = vsel %vm1202, %v1394, 0.0
  %v1411 = vrot.slane %v1410, 4
  %v1412 = vadd.f32 %v1410, %v1411
  %v1413 = vrot.slane %v1412, 2
  %v1414 = vadd.f32 %v1412, %v1413
  %v1415 = vrot.slane %v1414, 1
  %v1416 = vadd.f32 %v1414, %v1415
  %v1417 = vsel %vm1202, %v1395, 0.0
  %v1418 = vrot.slane %v1417, 4
  %v1419 = vadd.f32 %v1417, %v1418
  %v1420 = vrot.slane %v1419, 2
  %v1421 = vadd.f32 %v1419, %v1420
  %v1422 = vrot.slane %v1421, 1
  %v1423 = vadd.f32 %v1421, %v1422
  %v1424 = vadd.f32 %v1402, %v1416
  %v1425 = vadd.f32 %v1409, %v1423
  %v1426 = vmul.f32 %v1424, 64.0
  %v1427 = vmul.f32 %v1425, 64.0
  %v1428 = vrcp.pop %v1426
  %v1429 = vrcp.pop %v1427
  %v1430 = vmul.f32 %v1382, %v1428
  %v1431 = vmul.f32 %v1383, %v1429
  %v1432 = vmul.f32 %v1394, %v1428
  %v1433 = vmul.f32 %v1395, %v1429
  %v1434 = vsel %vm1296, %v1430, 0.0
  %1435 = vadd.xlane.f32.xlu0 %v1434
  %v1436 = vpop.xlane.xlu0 %1435
  %v1437 = vsel %vm1296, %v1431, 0.0
  %1438 = vadd.xlane.f32.xlu0 %v1437
  %v1439 = vpop.xlane.xlu0 %1438
  %v1440 = vmul.f32 %v1436, 10.0
  %v1441 = vmul.f32 %v1439, 10.0
  %v1442 = vrcp.pop %v1440
  %v1443 = vrcp.pop %v1441
  %v1444 = vmul.f32 %v1430, %v1442
  %v1445 = vmul.f32 %v1431, %v1443
  %v1446 = vsel %vm1202, %v1432, 0.0
  %1447 = vadd.xlane.f32.xlu0 %v1446
  %v1448 = vpop.xlane.xlu0 %1447
  %v1449 = vsel %vm1202, %v1433, 0.0
  %1450 = vadd.xlane.f32.xlu0 %v1449
  %v1451 = vpop.xlane.xlu0 %1450
  %v1452 = vmul.f32 %v1448, 10.0
  %v1453 = vmul.f32 %v1451, 10.0
  %v1454 = vrcp.pop %v1452
  %v1455 = vrcp.pop %v1453
  %v1456 = vmul.f32 %v1432, %v1454
  %v1457 = vmul.f32 %v1433, %v1455
  %v1458 = vsel %vm1296, %v1444, 0.0
  %v1459 = vrot.slane %v1458, 4
  %v1460 = vadd.f32 %v1458, %v1459
  %v1461 = vrot.slane %v1460, 2
  %v1462 = vadd.f32 %v1460, %v1461
  %v1463 = vrot.slane %v1462, 1
  %v1464 = vadd.f32 %v1462, %v1463
  %v1465 = vsel %vm1296, %v1445, 0.0
  %v1466 = vrot.slane %v1465, 4
  %v1467 = vadd.f32 %v1465, %v1466
  %v1468 = vrot.slane %v1467, 2
  %v1469 = vadd.f32 %v1467, %v1468
  %v1470 = vrot.slane %v1469, 1
  %v1471 = vadd.f32 %v1469, %v1470
  %v1472 = vsel %vm1202, %v1456, 0.0
  %v1473 = vrot.slane %v1472, 4
  %v1474 = vadd.f32 %v1472, %v1473
  %v1475 = vrot.slane %v1474, 2
  %v1476 = vadd.f32 %v1474, %v1475
  %v1477 = vrot.slane %v1476, 1
  %v1478 = vadd.f32 %v1476, %v1477
  %v1479 = vsel %vm1202, %v1457, 0.0
  %v1480 = vrot.slane %v1479, 4
  %v1481 = vadd.f32 %v1479, %v1480
  %v1482 = vrot.slane %v1481, 2
  %v1483 = vadd.f32 %v1481, %v1482
  %v1484 = vrot.slane %v1483, 1
  %v1485 = vadd.f32 %v1483, %v1484
  %v1486 = vadd.f32 %v1464, %v1478
  %v1487 = vadd.f32 %v1471, %v1485
  %v1488 = vmul.f32 %v1486, 64.0
  %v1489 = vmul.f32 %v1487, 64.0
  %v1490 = vrcp.pop %v1488
  %v1491 = vrcp.pop %v1489
  %v1492 = vmul.f32 %v1444, %v1490
  %v1493 = vmul.f32 %v1445, %v1491
  %v1494 = vmul.f32 %v1456, %v1490
  %v1495 = vmul.f32 %v1457, %v1491
  %v1496 = vsel %vm1296, %v1492, 0.0
  %1497 = vadd.xlane.f32.xlu0 %v1496
  %v1498 = vpop.xlane.xlu0 %1497
  %v1499 = vsel %vm1296, %v1493, 0.0
  %1500 = vadd.xlane.f32.xlu0 %v1499
  %v1501 = vpop.xlane.xlu0 %1500
  %v1502 = vmul.f32 %v1498, 10.0
  %v1503 = vmul.f32 %v1501, 10.0
  %v1504 = vrcp.pop %v1502
  %v1505 = vrcp.pop %v1503
  %v1506 = vmul.f32 %v1492, %v1504
  %v1507 = vmul.f32 %v1493, %v1505
  %v1508 = vsel %vm1202, %v1494, 0.0
  %1509 = vadd.xlane.f32.xlu0 %v1508
  %v1510 = vpop.xlane.xlu0 %1509
  %v1511 = vsel %vm1202, %v1495, 0.0
  %1512 = vadd.xlane.f32.xlu0 %v1511
  %v1513 = vpop.xlane.xlu0 %1512
  %v1514 = vmul.f32 %v1510, 10.0
  %v1515 = vmul.f32 %v1513, 10.0
  %v1516 = vrcp.pop %v1514
  %v1517 = vrcp.pop %v1515
  %v1518 = vmul.f32 %v1494, %v1516
  %v1519 = vmul.f32 %v1495, %v1517
  %1521 = vrot.lane.b32.xlu0 %v1507, 64
  %v1522 = vpop.permute.xlu0 %1521
  %v1524 = vsel %vm1296, %v1506, %v1522
  %v1525 = vmul.f32 %v1524, 10.0
  %1527 = vrot.lane.b32.xlu0 %v1519, 64
  %v1528 = vpop.permute.xlu0 %1527
  %v1530 = vsel %vm1296, %v1518, %v1528
  %v1531 = vmul.f32 %v1530, 10.0
  %1532 = vst [vmem:[%s14] sm:$0xff] %v1525
  %1533 = vst [vmem:[%s14 + $0x8] sm:$0x3] %v1531
  %v1534 = vld [vmem:[%s1] sm:$0xff]
  %v1535 = vld [vmem:[%s1 + $0x8] sm:$0xff]
  %v1536 = vld [vmem:[%s1 + $0x10] sm:$0xff]
  %v1537 = vld [vmem:[%s1 + $0x18] sm:$0xff]
  %v1538 = vld [vmem:[%s1 + $0x20] sm:$0xff]
  %v1539 = vld [vmem:[%s1 + $0x28] sm:$0xff]
  %v1540 = vld [vmem:[%s1 + $0x30] sm:$0xff]
  %v1541 = vld [vmem:[%s1 + $0x38] sm:$0xff]
  %v1542 = vld [vmem:[%s1 + $0x40] sm:$0xff]
  %v1543 = vld [vmem:[%s1 + $0x48] sm:$0xff]
  %v1544 = vld [vmem:[%s1 + $0x50] sm:$0xff]
  %v1545 = vld [vmem:[%s1 + $0x58] sm:$0xff]
  %v1546 = vld [vmem:[%s1 + $0x60] sm:$0xff]
  %v1547 = vld [vmem:[%s1 + $0x68] sm:$0xff]
  %v1548 = vld [vmem:[%s1 + $0x70] sm:$0xff]
  %v1549 = vld [vmem:[%s1 + $0x78] sm:$0xff]
  %v1550 = vld [vmem:[%s1 + $0x80] sm:$0xff]
  %v1551 = vld [vmem:[%s1 + $0x88] sm:$0xff]
  %v1552 = vld [vmem:[%s1 + $0x90] sm:$0xff]
  %v1553 = vld [vmem:[%s1 + $0x98] sm:$0xff]
  %v1554 = vld [vmem:[%s1 + $0xa0] sm:$0xff]
  %v1555 = vld [vmem:[%s1 + $0xa8] sm:$0xff]
  %v1556 = vld [vmem:[%s1 + $0xb0] sm:$0xff]
  %v1557 = vld [vmem:[%s1 + $0xb8] sm:$0xff]
  %v1558 = vld [vmem:[%s1 + $0xc0] sm:$0xff]
  %v1559 = vld [vmem:[%s1 + $0xc8] sm:$0xff]
  %v1560 = vld [vmem:[%s1 + $0xd0] sm:$0xff]
  %v1561 = vld [vmem:[%s1 + $0xd8] sm:$0xff]
  %v1562 = vld [vmem:[%s1 + $0xe0] sm:$0xff]
  %v1563 = vld [vmem:[%s1 + $0xe8] sm:$0xff]
  %v1564 = vld [vmem:[%s1 + $0xf0] sm:$0xff]
  %v1565 = vld [vmem:[%s1 + $0xf8] sm:$0xff]
  %v1567 = vsel %vm135, %v1534, 0
  %v1570 = vsel %vm135, %v1535, 0
  %v1573 = vsel %vm135, %v1536, 0
  %v1576 = vsel %vm135, %v1537, 0
  %v1579 = vsel %vm135, %v1538, 0
  %v1582 = vsel %vm135, %v1539, 0
  %v1585 = vsel %vm135, %v1540, 0
  %v1588 = vsel %vm135, %v1541, 0
  %v1591 = vsel %vm135, %v1542, 0
  %v1594 = vsel %vm135, %v1543, 0
  %v1597 = vsel %vm135, %v1544, 0
  %v1600 = vsel %vm135, %v1545, 0
  %v1603 = vsel %vm135, %v1546, 0
  %v1606 = vsel %vm135, %v1547, 0
  %v1609 = vsel %vm135, %v1548, 0
  %v1612 = vsel %vm135, %v1549, 0
  %v1615 = vsel %vm135, %v1550, 0
  %v1618 = vsel %vm135, %v1551, 0
  %v1621 = vsel %vm135, %v1552, 0
  %v1624 = vsel %vm135, %v1553, 0
  %v1627 = vsel %vm135, %v1554, 0
  %v1630 = vsel %vm135, %v1555, 0
  %v1633 = vsel %vm135, %v1556, 0
  %v1636 = vsel %vm135, %v1557, 0
  %v1639 = vsel %vm135, %v1558, 0
  %v1642 = vsel %vm135, %v1559, 0
  %v1645 = vsel %vm135, %v1560, 0
  %v1648 = vsel %vm135, %v1561, 0
  %v1651 = vsel %vm135, %v1562, 0
  %v1654 = vsel %vm135, %v1563, 0
  %v1657 = vsel %vm135, %v1564, 0
  %v1660 = vsel %vm135, %v1565, 0
  %1662 = vmatprep.subr.mxu0 0.0
  %1663 = vmatpush1.msra.mxu0 %v45
  %1664 = vmatprep.subr.mxu0 0.0
  %1665 = vmatpush1.msra.mxu0 %v46
  %1666 = vmatprep.subr.mxu0 0.0
  %1667 = vmatpush1.msra.mxu0 %v47
  %1668 = vmatprep.subr.mxu0 0.0
  %1669 = vmatpush1.msra.mxu0 %v48
  %1670 = vmatprep.subr.mxu0 0.0
  %1671 = vmatpush1.msra.mxu0 %v330
  %1672 = vmatprep.subr.mxu0 0.0
  %1673 = vmatpush1.msra.mxu0 0.0
  %1674 = vmatprep.subr.mxu0 0.0
  %1675 = vmatpush1.msra.mxu0 0.0
  %1676 = vmatprep.subr.mxu0 0.0
  %1677 = vmatpush1.msra.mxu0 0.0
  %1678 = vmatprep.subr.mxu0 0.0
  %1679 = vmatpush1.msra.mxu0 0.0
  %1680 = vmatprep.subr.mxu0 0.0
  %1681 = vmatpush1.msra.mxu0 0.0
  %1682 = vmatprep.subr.mxu0 0.0
  %1683 = vmatpush1.msra.mxu0 0.0
  %1684 = vmatprep.subr.mxu0 0.0
  %1685 = vmatpush1.msra.mxu0 0.0
  %1686 = vmatprep.subr.mxu0 0.0
  %1687 = vmatpush1.msra.mxu0 0.0
  %1688 = vmatprep.subr.mxu0 0.0
  %1689 = vmatpush1.msra.mxu0 0.0
  %1690 = vmatprep.subr.mxu0 0.0
  %1691 = vmatpush1.msra.mxu0 0.0
  %1692 = vmatprep.subr.mxu0 0.0
  %1693 = vmatpush1.msra.mxu0 0.0
  %1694 = vmatprep.subr.mxu0 0.0
  %1695 = vmatpush1.msra.mxu0 0.0
  %1696 = vmatprep.subr.mxu0 0.0
  %1697 = vmatpush1.msra.mxu0 0.0
  %1698 = vmatprep.subr.mxu0 0.0
  %1699 = vmatpush1.msra.mxu0 0.0
  %1700 = vmatprep.subr.mxu0 0.0
  %1701 = vmatpush1.msra.mxu0 0.0
  %1702 = vmatprep.subr.mxu0 0.0
  %1703 = vmatpush1.msra.mxu0 0.0
  %1704 = vmatprep.subr.mxu0 0.0
  %1705 = vmatpush1.msra.mxu0 0.0
  %1706 = vmatprep.subr.mxu0 0.0
  %1707 = vmatpush1.msra.mxu0 0.0
  %1708 = vmatprep.subr.mxu0 0.0
  %1709 = vmatpush1.msra.mxu0 0.0
  %1710 = vmatprep.subr.mxu0 0.0
  %1711 = vmatpush1.msra.mxu0 0.0
  %1712 = vmatprep.subr.mxu0 0.0
  %1713 = vmatpush1.msra.mxu0 0.0
  %1714 = vmatprep.subr.mxu0 0.0
  %1715 = vmatpush1.msra.mxu0 0.0
  %1716 = vmatprep.subr.mxu0 0.0
  %1717 = vmatpush1.msra.mxu0 0.0
  %1718 = vmatprep.subr.mxu0 0.0
  %1719 = vmatpush1.msra.mxu0 0.0
  %1720 = vmatprep.subr.mxu0 0.0
  %1721 = vmatpush1.msra.mxu0 0.0
  %1722 = vmatprep.subr.mxu0 0.0
  %1723 = vmatpush1.msra.mxu0 0.0
  %1724 = vmatprep.subr.mxu0 0.0
  %1725 = vmatpush1.msra.mxu0 0.0
  %1726 = vmatprep.mubr.f32.mxu0 0.0
  %1727 = vmatmul.mubr.f32.gmra.mrb[0].mxu0 %v1567
  %v1728 = vpop.f32.mrb[0].mxu0
  %v1729 = vadd.f32 %v133, %v1728
  %v1730 = vpop.f32.mrb[0].mxu0
  %1731 = vmatprep.mubr.f32.mxu0 0.0
  %1732 = vmatmul.mubr.f32.gmra.mrb[0].mxu0 %v1570
  %v1733 = vpop.f32.mrb[0].mxu0
  %v1734 = vadd.f32 %v133, %v1733
  %v1735 = vpop.f32.mrb[0].mxu0
  %1736 = vmatprep.mubr.f32.mxu0 0.0
  %1737 = vmatmul.mubr.f32.gmra.mrb[0].mxu0 %v1573
  %v1738 = vpop.f32.mrb[0].mxu0
  %v1739 = vadd.f32 %v133, %v1738
  %v1740 = vpop.f32.mrb[0].mxu0
  %1741 = vmatprep.mubr.f32.mxu0 0.0
  %1742 = vmatmul.mubr.f32.gmra.mrb[0].mxu0 %v1576
  %v1743 = vpop.f32.mrb[0].mxu0
  %v1744 = vadd.f32 %v133, %v1743
  %v1745 = vpop.f32.mrb[0].mxu0
  %1746 = vmatprep.mubr.f32.mxu0 0.0
  %1747 = vmatmul.mubr.f32.gmra.mrb[0].mxu0 %v1579
  %v1748 = vpop.f32.mrb[0].mxu0
  %v1749 = vadd.f32 %v133, %v1748
  %v1750 = vpop.f32.mrb[0].mxu0
  %1751 = vmatprep.mubr.f32.mxu0 0.0
  %1752 = vmatmul.mubr.f32.gmra.mrb[0].mxu0 %v1582
  %v1753 = vpop.f32.mrb[0].mxu0
  %v1754 = vadd.f32 %v133, %v1753
  %v1755 = vpop.f32.mrb[0].mxu0
  %1756 = vmatprep.mubr.f32.mxu0 0.0
  %1757 = vmatmul.mubr.f32.gmra.mrb[0].mxu0 %v1585
  %v1758 = vpop.f32.mrb[0].mxu0
  %v1759 = vadd.f32 %v133, %v1758
  %v1760 = vpop.f32.mrb[0].mxu0
  %1761 = vmatprep.mubr.f32.mxu0 0.0
  %1762 = vmatmul.mubr.f32.gmra.mrb[0].mxu0 %v1588
  %v1763 = vpop.f32.mrb[0].mxu0
  %v1764 = vadd.f32 %v133, %v1763
  %v1765 = vpop.f32.mrb[0].mxu0
  %1766 = vmatprep.mubr.f32.mxu0 0.0
  %1767 = vmatmul.mubr.f32.gmra.mrb[0].mxu0 %v1591
  %v1768 = vpop.f32.mrb[0].mxu0
  %v1769 = vadd.f32 %v133, %v1768
  %v1770 = vpop.f32.mrb[0].mxu0
  %1771 = vmatprep.mubr.f32.mxu0 0.0
  %1772 = vmatmul.mubr.f32.gmra.mrb[0].mxu0 %v1594
  %v1773 = vpop.f32.mrb[0].mxu0
  %v1774 = vadd.f32 %v133, %v1773
  %v1775 = vpop.f32.mrb[0].mxu0
  %1776 = vmatprep.mubr.f32.mxu0 0.0
  %1777 = vmatmul.mubr.f32.gmra.mrb[0].mxu0 %v1597
  %v1778 = vpop.f32.mrb[0].mxu0
  %v1779 = vadd.f32 %v133, %v1778
  %v1780 = vpop.f32.mrb[0].mxu0
  %1781 = vmatprep.mubr.f32.mxu0 0.0
  %1782 = vmatmul.mubr.f32.gmra.mrb[0].mxu0 %v1600
  %v1783 = vpop.f32.mrb[0].mxu0
  %v1784 = vadd.f32 %v133, %v1783
  %v1785 = vpop.f32.mrb[0].mxu0
  %1786 = vmatprep.mubr.f32.mxu0 0.0
  %1787 = vmatmul.mubr.f32.gmra.mrb[0].mxu0 %v1603
  %v1788 = vpop.f32.mrb[0].mxu0
  %v1789 = vadd.f32 %v133, %v1788
  %v1790 = vpop.f32.mrb[0].mxu0
  %1791 = vmatprep.mubr.f32.mxu0 0.0
  %1792 = vmatmul.mubr.f32.gmra.mrb[0].mxu0 %v1606
  %v1793 = vpop.f32.mrb[0].mxu0
  %v1794 = vadd.f32 %v133, %v1793
  %v1795 = vpop.f32.mrb[0].mxu0
  %1796 = vmatprep.mubr.f32.mxu0 0.0
  %1797 = vmatmul.mubr.f32.gmra.mrb[0].mxu0 %v1609
  %v1798 = vpop.f32.mrb[0].mxu0
  %v1799 = vadd.f32 %v133, %v1798
  %v1800 = vpop.f32.mrb[0].mxu0
  %1801 = vmatprep.mubr.f32.mxu0 0.0
  %1802 = vmatmul.mubr.f32.gmra.mrb[0].mxu0 %v1612
  %v1803 = vpop.f32.mrb[0].mxu0
  %v1804 = vadd.f32 %v133, %v1803
  %v1805 = vpop.f32.mrb[0].mxu0
  %1806 = vmatprep.mubr.f32.mxu0 0.0
  %1807 = vmatmul.mubr.f32.gmra.mrb[0].mxu0 %v1615
  %v1808 = vpop.f32.mrb[0].mxu0
  %v1809 = vadd.f32 %v133, %v1808
  %v1810 = vpop.f32.mrb[0].mxu0
  %1811 = vmatprep.mubr.f32.mxu0 0.0
  %1812 = vmatmul.mubr.f32.gmra.mrb[0].mxu0 %v1618
  %v1813 = vpop.f32.mrb[0].mxu0
  %v1814 = vadd.f32 %v133, %v1813
  %v1815 = vpop.f32.mrb[0].mxu0
  %1816 = vmatprep.mubr.f32.mxu0 0.0
  %1817 = vmatmul.mubr.f32.gmra.mrb[0].mxu0 %v1621
  %v1818 = vpop.f32.mrb[0].mxu0
  %v1819 = vadd.f32 %v133, %v1818
  %v1820 = vpop.f32.mrb[0].mxu0
  %1821 = vmatprep.mubr.f32.mxu0 0.0
  %1822 = vmatmul.mubr.f32.gmra.mrb[0].mxu0 %v1624
  %v1823 = vpop.f32.mrb[0].mxu0
  %v1824 = vadd.f32 %v133, %v1823
  %v1825 = vpop.f32.mrb[0].mxu0
  %1826 = vmatprep.mubr.f32.mxu0 0.0
  %1827 = vmatmul.mubr.f32.gmra.mrb[0].mxu0 %v1627
  %v1828 = vpop.f32.mrb[0].mxu0
  %v1829 = vadd.f32 %v133, %v1828
  %v1830 = vpop.f32.mrb[0].mxu0
  %1831 = vmatprep.mubr.f32.mxu0 0.0
  %1832 = vmatmul.mubr.f32.gmra.mrb[0].mxu0 %v1630
  %v1833 = vpop.f32.mrb[0].mxu0
  %v1834 = vadd.f32 %v133, %v1833
  %v1835 = vpop.f32.mrb[0].mxu0
  %1836 = vmatprep.mubr.f32.mxu0 0.0
  %1837 = vmatmul.mubr.f32.gmra.mrb[0].mxu0 %v1633
  %v1838 = vpop.f32.mrb[0].mxu0
  %v1839 = vadd.f32 %v133, %v1838
  %v1840 = vpop.f32.mrb[0].mxu0
  %1841 = vmatprep.mubr.f32.mxu0 0.0
  %1842 = vmatmul.mubr.f32.gmra.mrb[0].mxu0 %v1636
  %v1843 = vpop.f32.mrb[0].mxu0
  %v1844 = vadd.f32 %v133, %v1843
  %v1845 = vpop.f32.mrb[0].mxu0
  %1846 = vmatprep.mubr.f32.mxu0 0.0
  %1847 = vmatmul.mubr.f32.gmra.mrb[0].mxu0 %v1639
  %v1848 = vpop.f32.mrb[0].mxu0
  %v1849 = vadd.f32 %v133, %v1848
  %v1850 = vpop.f32.mrb[0].mxu0
  %1851 = vmatprep.mubr.f32.mxu0 0.0
  %1852 = vmatmul.mubr.f32.gmra.mrb[0].mxu0 %v1642
  %v1853 = vpop.f32.mrb[0].mxu0
  %v1854 = vadd.f32 %v133, %v1853
  %v1855 = vpop.f32.mrb[0].mxu0
  %1856 = vmatprep.mubr.f32.mxu0 0.0
  %1857 = vmatmul.mubr.f32.gmra.mrb[0].mxu0 %v1645
  %v1858 = vpop.f32.mrb[0].mxu0
  %v1859 = vadd.f32 %v133, %v1858
  %v1860 = vpop.f32.mrb[0].mxu0
  %1861 = vmatprep.mubr.f32.mxu0 0.0
  %1862 = vmatmul.mubr.f32.gmra.mrb[0].mxu0 %v1648
  %v1863 = vpop.f32.mrb[0].mxu0
  %v1864 = vadd.f32 %v133, %v1863
  %v1865 = vpop.f32.mrb[0].mxu0
  %1866 = vmatprep.mubr.f32.mxu0 0.0
  %1867 = vmatmul.mubr.f32.gmra.mrb[0].mxu0 %v1651
  %v1868 = vpop.f32.mrb[0].mxu0
  %v1869 = vadd.f32 %v133, %v1868
  %v1870 = vpop.f32.mrb[0].mxu0
  %1871 = vmatprep.mubr.f32.mxu0 0.0
  %1872 = vmatmul.mubr.f32.gmra.mrb[0].mxu0 %v1654
  %v1873 = vpop.f32.mrb[0].mxu0
  %v1874 = vadd.f32 %v133, %v1873
  %v1875 = vpop.f32.mrb[0].mxu0
  %1876 = vmatprep.mubr.f32.mxu0 0.0
  %1877 = vmatmul.mubr.f32.gmra.mrb[0].mxu0 %v1657
  %v1878 = vpop.f32.mrb[0].mxu0
  %v1879 = vadd.f32 %v133, %v1878
  %v1880 = vpop.f32.mrb[0].mxu0
  %1881 = vmatprep.mubr.f32.mxu0 0.0
  %1882 = vmatmul.mubr.f32.gmra.mrb[0].mxu0 %v1660
  %v1883 = vpop.f32.mrb[0].mxu0
  %v1884 = vadd.f32 %v133, %v1883
  %v1885 = vpop.f32.mrb[0].mxu0
  %1886 = vdwg.mxu0
  %v1887 = vmax.f32 %v1729, 0.0
  %v1888 = vmax.f32 %v1734, 0.0
  %v1889 = vmax.f32 %v1739, 0.0
  %v1890 = vmax.f32 %v1744, 0.0
  %v1891 = vmax.f32 %v1749, 0.0
  %v1892 = vmax.f32 %v1754, 0.0
  %v1893 = vmax.f32 %v1759, 0.0
  %v1894 = vmax.f32 %v1764, 0.0
  %v1895 = vmax.f32 %v1769, 0.0
  %v1896 = vmax.f32 %v1774, 0.0
  %v1897 = vmax.f32 %v1779, 0.0
  %v1898 = vmax.f32 %v1784, 0.0
  %v1899 = vmax.f32 %v1789, 0.0
  %v1900 = vmax.f32 %v1794, 0.0
  %v1901 = vmax.f32 %v1799, 0.0
  %v1902 = vmax.f32 %v1804, 0.0
  %v1903 = vmax.f32 %v1809, 0.0
  %v1904 = vmax.f32 %v1814, 0.0
  %v1905 = vmax.f32 %v1819, 0.0
  %v1906 = vmax.f32 %v1824, 0.0
  %v1907 = vmax.f32 %v1829, 0.0
  %v1908 = vmax.f32 %v1834, 0.0
  %v1909 = vmax.f32 %v1839, 0.0
  %v1910 = vmax.f32 %v1844, 0.0
  %v1911 = vmax.f32 %v1849, 0.0
  %v1912 = vmax.f32 %v1854, 0.0
  %v1913 = vmax.f32 %v1859, 0.0
  %v1914 = vmax.f32 %v1864, 0.0
  %v1915 = vmax.f32 %v1869, 0.0
  %v1916 = vmax.f32 %v1874, 0.0
  %v1917 = vmax.f32 %v1879, 0.0
  %v1918 = vmax.f32 %v1884, 0.0
  %v1919 = vsel %vm781, %v1887, 0.0
  %v1920 = vsel %vm781, %v1888, 0.0
  %v1921 = vadd.f32 %v1919, %v1920
  %v1922 = vsel %vm781, %v1889, 0.0
  %v1923 = vadd.f32 %v1921, %v1922
  %v1924 = vsel %vm781, %v1890, 0.0
  %v1925 = vadd.f32 %v1923, %v1924
  %v1926 = vsel %vm781, %v1891, 0.0
  %v1927 = vadd.f32 %v1925, %v1926
  %v1928 = vsel %vm781, %v1892, 0.0
  %v1929 = vadd.f32 %v1927, %v1928
  %v1930 = vsel %vm781, %v1893, 0.0
  %v1931 = vadd.f32 %v1929, %v1930
  %v1932 = vsel %vm781, %v1894, 0.0
  %v1933 = vadd.f32 %v1931, %v1932
  %v1934 = vrot.slane %v1933, 4
  %v1935 = vadd.f32 %v1933, %v1934
  %v1936 = vrot.slane %v1935, 2
  %v1937 = vadd.f32 %v1935, %v1936
  %v1938 = vrot.slane %v1937, 1
  %v1939 = vadd.f32 %v1937, %v1938
  %v1940 = vsel %vm781, %v1895, 0.0
  %v1941 = vsel %vm781, %v1896, 0.0
  %v1942 = vadd.f32 %v1940, %v1941
  %v1943 = vsel %vm781, %v1897, 0.0
  %v1944 = vadd.f32 %v1942, %v1943
  %v1945 = vsel %vm781, %v1898, 0.0
  %v1946 = vadd.f32 %v1944, %v1945
  %v1947 = vsel %vm781, %v1899, 0.0
  %v1948 = vadd.f32 %v1946, %v1947
  %v1949 = vsel %vm781, %v1900, 0.0
  %v1950 = vadd.f32 %v1948, %v1949
  %v1951 = vsel %vm781, %v1901, 0.0
  %v1952 = vadd.f32 %v1950, %v1951
  %v1953 = vsel %vm781, %v1902, 0.0
  %v1954 = vadd.f32 %v1952, %v1953
  %v1955 = vrot.slane %v1954, 4
  %v1956 = vadd.f32 %v1954, %v1955
  %v1957 = vrot.slane %v1956, 2
  %v1958 = vadd.f32 %v1956, %v1957
  %v1959 = vrot.slane %v1958, 1
  %v1960 = vadd.f32 %v1958, %v1959
  %v1961 = vsel %vm781, %v1903, 0.0
  %v1962 = vsel %vm781, %v1904, 0.0
  %v1963 = vadd.f32 %v1961, %v1962
  %v1964 = vsel %vm781, %v1905, 0.0
  %v1965 = vadd.f32 %v1963, %v1964
  %v1966 = vsel %vm781, %v1906, 0.0
  %v1967 = vadd.f32 %v1965, %v1966
  %v1968 = vsel %vm781, %v1907, 0.0
  %v1969 = vadd.f32 %v1967, %v1968
  %v1970 = vsel %vm781, %v1908, 0.0
  %v1971 = vadd.f32 %v1969, %v1970
  %v1972 = vsel %vm781, %v1909, 0.0
  %v1973 = vadd.f32 %v1971, %v1972
  %v1974 = vsel %vm781, %v1910, 0.0
  %v1975 = vadd.f32 %v1973, %v1974
  %v1976 = vrot.slane %v1975, 4
  %v1977 = vadd.f32 %v1975, %v1976
  %v1978 = vrot.slane %v1977, 2
  %v1979 = vadd.f32 %v1977, %v1978
  %v1980 = vrot.slane %v1979, 1
  %v1981 = vadd.f32 %v1979, %v1980
  %v1982 = vsel %vm781, %v1911, 0.0
  %v1983 = vsel %vm781, %v1912, 0.0
  %v1984 = vadd.f32 %v1982, %v1983
  %v1985 = vsel %vm781, %v1913, 0.0
  %v1986 = vadd.f32 %v1984, %v1985
  %v1987 = vsel %vm781, %v1914, 0.0
  %v1988 = vadd.f32 %v1986, %v1987
  %v1989 = vsel %vm781, %v1915, 0.0
  %v1990 = vadd.f32 %v1988, %v1989
  %v1991 = vsel %vm781, %v1916, 0.0
  %v1992 = vadd.f32 %v1990, %v1991
  %v1993 = vsel %vm781, %v1917, 0.0
  %v1994 = vadd.f32 %v1992, %v1993
  %v1995 = vsel %vm781, %v1918, 0.0
  %v1996 = vadd.f32 %v1994, %v1995
  %v1997 = vrot.slane %v1996, 4
  %v1998 = vadd.f32 %v1996, %v1997
  %v1999 = vrot.slane %v1998, 2
  %v2000 = vadd.f32 %v1998, %v1999
  %v2001 = vrot.slane %v2000, 1
  %v2002 = vadd.f32 %v2000, %v2001
  %v2003 = vsel %vm920, %v1939, %v1960
  %v2004 = vsel %vm1318, %v2003, %v1981
  %vm2005 = vcmask 1042432
  %v2006 = vsel %vm2005, %v2004, %v2002
  %v2007 = vmul.f32 %v2006, 0.015625
  %v2009 = vsel %vm781, %v2007, 0
  %2011 = vmatprep.subr.mxu0 0.0
  %2012 = vmatpush1.msra.mxu0 %v51
  %2013 = vmatprep.subr.mxu0 0.0
  %2014 = vmatpush1.msra.mxu0 %v52
  %2015 = vmatprep.subr.mxu0 0.0
  %2016 = vmatpush1.msra.mxu0 %v53
  %2017 = vmatprep.subr.mxu0 0.0
  %2018 = vmatpush1.msra.mxu0 %v54
  %2019 = vmatprep.subr.mxu0 0.0
  %2020 = vmatpush1.msra.mxu0 0.0
  %2021 = vmatprep.subr.mxu0 0.0
  %2022 = vmatpush1.msra.mxu0 0.0
  %2023 = vmatprep.subr.mxu0 0.0
  %2024 = vmatpush1.msra.mxu0 0.0
  %2025 = vmatprep.subr.mxu0 0.0
  %2026 = vmatpush1.msra.mxu0 0.0
  %2027 = vmatprep.subr.mxu0 0.0
  %2028 = vmatpush1.msra.mxu0 0.0
  %2029 = vmatprep.subr.mxu0 0.0
  %2030 = vmatpush1.msra.mxu0 0.0
  %2031 = vmatprep.subr.mxu0 0.0
  %2032 = vmatpush1.msra.mxu0 0.0
  %2033 = vmatprep.subr.mxu0 0.0
  %2034 = vmatpush1.msra.mxu0 0.0
  %2035 = vmatprep.subr.mxu0 0.0
  %2036 = vmatpush1.msra.mxu0 0.0
  %2037 = vmatprep.subr.mxu0 0.0
  %2038 = vmatpush1.msra.mxu0 0.0
  %2039 = vmatprep.subr.mxu0 0.0
  %2040 = vmatpush1.msra.mxu0 0.0
  %2041 = vmatprep.subr.mxu0 0.0
  %2042 = vmatpush1.msra.mxu0 0.0
  %2043 = vmatprep.subr.mxu0 0.0
  %2044 = vmatpush1.msra.mxu0 0.0
  %2045 = vmatprep.subr.mxu0 0.0
  %2046 = vmatpush1.msra.mxu0 0.0
  %2047 = vmatprep.subr.mxu0 0.0
  %2048 = vmatpush1.msra.mxu0 0.0
  %2049 = vmatprep.subr.mxu0 0.0
  %2050 = vmatpush1.msra.mxu0 0.0
  %2051 = vmatprep.subr.mxu0 0.0
  %2052 = vmatpush1.msra.mxu0 0.0
  %2053 = vmatprep.subr.mxu0 0.0
  %2054 = vmatpush1.msra.mxu0 0.0
  %2055 = vmatprep.subr.mxu0 0.0
  %2056 = vmatpush1.msra.mxu0 0.0
  %2057 = vmatprep.subr.mxu0 0.0
  %2058 = vmatpush1.msra.mxu0 0.0
  %2059 = vmatprep.subr.mxu0 0.0
  %2060 = vmatpush1.msra.mxu0 0.0
  %2061 = vmatprep.subr.mxu0 0.0
  %2062 = vmatpush1.msra.mxu0 0.0
  %2063 = vmatprep.subr.mxu0 0.0
  %2064 = vmatpush1.msra.mxu0 0.0
  %2065 = vmatprep.subr.mxu0 0.0
  %2066 = vmatpush1.msra.mxu0 0.0
  %2067 = vmatprep.subr.mxu0 0.0
  %2068 = vmatpush1.msra.mxu0 0.0
  %2069 = vmatprep.subr.mxu0 0.0
  %2070 = vmatpush1.msra.mxu0 0.0
  %2071 = vmatprep.subr.mxu0 0.0
  %2072 = vmatpush1.msra.mxu0 0.0
  %2073 = vmatprep.subr.mxu0 0.0
  %2074 = vmatpush1.msra.mxu0 0.0
  %2075 = vmatprep.mubr.f32.mxu0 0.0
  %2076 = vmatmul.mubr.f32.gmra.mrb[0].mxu0 %v2009
  %v2077 = vpop.f32.mrb[0].mxu0
  %v2078 = vadd.f32 %v927, %v2077
  %v2079 = vpop.f32.mrb[0].mxu0
  %2080 = vdwg.mxu0
  %v2081 = vsel %vm1002, %v2078, 0.0
  %v2082 = vrot.slane %v2081, 4
  %v2083 = vadd.f32 %v2081, %v2082
  %v2084 = vrot.slane %v2083, 2
  %v2085 = vadd.f32 %v2083, %v2084
  %v2086 = vrot.slane %v2085, 1
  %v2087 = vadd.f32 %v2085, %v2086
  %v2088 = vmul.f32 %v2087, %v1010
  %v2089 = vsub.f32 %v2078, %v2088
  %v2090 = vmul.f32 %v2089, %v2089
  %v2091 = vsel %vm1002, %v2090, 0.0
  %v2092 = vrot.slane %v2091, 4
  %v2093 = vadd.f32 %v2091, %v2092
  %v2094 = vrot.slane %v2093, 2
  %v2095 = vadd.f32 %v2093, %v2094
  %v2096 = vrot.slane %v2095, 1
  %v2097 = vadd.f32 %v2095, %v2096
  %v2098 = vmul.f32 %v2097, %v1010
  %v2099 = vadd.f32 %v2098, 1e-05
  %v2100 = vrsqrt.pop %v2099
  %v2101 = vmul.f32 %v2089, %v2100
  %v2103 = vrot.slane %v2078, 2
  %v2105 = vsel %vm1002, %v2103, 0.0
  %v2106 = vrot.slane %v2105, 4
  %v2107 = vadd.f32 %v2105, %v2106
  %v2108 = vrot.slane %v2107, 2
  %v2109 = vadd.f32 %v2107, %v2108
  %v2110 = vrot.slane %v2109, 1
  %v2111 = vadd.f32 %v2109, %v2110
  %v2112 = vmul.f32 %v2111, %v1010
  %v2113 = vsub.f32 %v2078, %v2112
  %v2114 = vmul.f32 %v2113, %v2113
  %v2116 = vrot.slane %v2114, 2
  %v2118 = vsel %vm1002, %v2116, 0.0
  %v2119 = vrot.slane %v2118, 4
  %v2120 = vadd.f32 %v2118, %v2119
  %v2121 = vrot.slane %v2120, 2
  %v2122 = vadd.f32 %v2120, %v2121
  %v2123 = vrot.slane %v2122, 1
  %v2124 = vadd.f32 %v2122, %v2123
  %v2125 = vmul.f32 %v2124, %v1010
  %v2126 = vadd.f32 %v2125, 1e-05
  %v2127 = vrsqrt.pop %v2126
  %v2128 = vmul.f32 %v2113, %v2127
  %v2129 = vsel %vm1318, %v2101, %v2128
  %v2130 = vmul.f32 %v2129, %v1029
  %v2131 = vadd.f32 %v2130, %v1036
  %v2132 = vmax.f32 %v2131, 0.0
  %v2134 = vsel %vm781, %v2132, 0
  %2136 = vmatprep.subr.mxu0 0.0
  %2137 = vmatpush1.msra.mxu0 %v58
  %2138 = vmatprep.subr.mxu0 0.0
  %2139 = vmatpush1.msra.mxu0 %v59
  %2140 = vmatprep.subr.mxu0 0.0
  %2141 = vmatpush1.msra.mxu0 %v60
  %2142 = vmatprep.subr.mxu0 0.0
  %2143 = vmatpush1.msra.mxu0 %v61
  %2144 = vmatprep.subr.mxu0 0.0
  %2145 = vmatpush1.msra.mxu0 0.0
  %2146 = vmatprep.subr.mxu0 0.0
  %2147 = vmatpush1.msra.mxu0 0.0
  %2148 = vmatprep.subr.mxu0 0.0
  %2149 = vmatpush1.msra.mxu0 0.0
  %2150 = vmatprep.subr.mxu0 0.0
  %2151 = vmatpush1.msra.mxu0 0.0
  %2152 = vmatprep.subr.mxu0 0.0
  %2153 = vmatpush1.msra.mxu0 0.0
  %2154 = vmatprep.subr.mxu0 0.0
  %2155 = vmatpush1.msra.mxu0 0.0
  %2156 = vmatprep.subr.mxu0 0.0
  %2157 = vmatpush1.msra.mxu0 0.0
  %2158 = vmatprep.subr.mxu0 0.0
  %2159 = vmatpush1.msra.mxu0 0.0
  %2160 = vmatprep.subr.mxu0 0.0
  %2161 = vmatpush1.msra.mxu0 0.0
  %2162 = vmatprep.subr.mxu0 0.0
  %2163 = vmatpush1.msra.mxu0 0.0
  %2164 = vmatprep.subr.mxu0 0.0
  %2165 = vmatpush1.msra.mxu0 0.0
  %2166 = vmatprep.subr.mxu0 0.0
  %2167 = vmatpush1.msra.mxu0 0.0
  %2168 = vmatprep.subr.mxu0 0.0
  %2169 = vmatpush1.msra.mxu0 0.0
  %2170 = vmatprep.subr.mxu0 0.0
  %2171 = vmatpush1.msra.mxu0 0.0
  %2172 = vmatprep.subr.mxu0 0.0
  %2173 = vmatpush1.msra.mxu0 0.0
  %2174 = vmatprep.subr.mxu0 0.0
  %2175 = vmatpush1.msra.mxu0 0.0
  %2176 = vmatprep.subr.mxu0 0.0
  %2177 = vmatpush1.msra.mxu0 0.0
  %2178 = vmatprep.subr.mxu0 0.0
  %2179 = vmatpush1.msra.mxu0 0.0
  %2180 = vmatprep.subr.mxu0 0.0
  %2181 = vmatpush1.msra.mxu0 0.0
  %2182 = vmatprep.subr.mxu0 0.0
  %2183 = vmatpush1.msra.mxu0 0.0
  %2184 = vmatprep.subr.mxu0 0.0
  %2185 = vmatpush1.msra.mxu0 0.0
  %2186 = vmatprep.subr.mxu0 0.0
  %2187 = vmatpush1.msra.mxu0 0.0
  %2188 = vmatprep.subr.mxu0 0.0
  %2189 = vmatpush1.msra.mxu0 0.0
  %2190 = vmatprep.subr.mxu0 0.0
  %2191 = vmatpush1.msra.mxu0 0.0
  %2192 = vmatprep.subr.mxu0 0.0
  %2193 = vmatpush1.msra.mxu0 0.0
  %2194 = vmatprep.subr.mxu0 0.0
  %2195 = vmatpush1.msra.mxu0 0.0
  %2196 = vmatprep.subr.mxu0 0.0
  %2197 = vmatpush1.msra.mxu0 0.0
  %2198 = vmatprep.subr.mxu0 0.0
  %2199 = vmatpush1.msra.mxu0 0.0
  %2200 = vmatprep.mubr.f32.mxu0 0.0
  %2201 = vmatmul.mubr.f32.gmra.mrb[0].mxu0 %v2134
  %v2202 = vpop.f32.mrb[0].mxu0
  %v2203 = vadd.f32 %v1044, %v2202
  %v2204 = vpop.f32.mrb[0].mxu0
  %2205 = vdwg.mxu0
  %v2206 = vmul.f32 %v2203, %v2203
  %vm2207 = vcmask 125952
  %v2208 = vsel %vm2207, %v2206, 0.0
  %2209 = vadd.xlane.f32.xlu0 %v2208
  %v2210 = vpop.xlane.xlu0 %2209
  %v2211 = vmax.f32 %v2210, 1e-24
  %v2212 = vrsqrt.pop %v2211
  %v2213 = vmul.f32 %v2203, %v2212
  %v2215 = vsel %vm1127, %v2213, 0
  %2217 = vmatprep.subr.mxu0 0.0
  %2218 = vmatpush1.msra.mxu0 %v63
  %2219 = vmatprep.subr.mxu0 0.0
  %2220 = vmatpush1.msra.mxu0 %v64
  %2221 = vmatprep.subr.mxu0 0.0
  %2222 = vmatpush1.msra.mxu0 0.0
  %2223 = vmatprep.subr.mxu0 0.0
  %2224 = vmatpush1.msra.mxu0 0.0
  %2225 = vmatprep.subr.mxu0 0.0
  %2226 = vmatpush1.msra.mxu0 0.0
  %2227 = vmatprep.subr.mxu0 0.0
  %2228 = vmatpush1.msra.mxu0 0.0
  %2229 = vmatprep.subr.mxu0 0.0
  %2230 = vmatpush1.msra.mxu0 0.0
  %2231 = vmatprep.subr.mxu0 0.0
  %2232 = vmatpush1.msra.mxu0 0.0
  %2233 = vmatprep.subr.mxu0 0.0
  %2234 = vmatpush1.msra.mxu0 0.0
  %2235 = vmatprep.subr.mxu0 0.0
  %2236 = vmatpush1.msra.mxu0 0.0
  %2237 = vmatprep.subr.mxu0 0.0
  %2238 = vmatpush1.msra.mxu0 0.0
  %2239 = vmatprep.subr.mxu0 0.0
  %2240 = vmatpush1.msra.mxu0 0.0
  %2241 = vmatprep.subr.mxu0 0.0
  %2242 = vmatpush1.msra.mxu0 0.0
  %2243 = vmatprep.subr.mxu0 0.0
  %2244 = vmatpush1.msra.mxu0 0.0
  %2245 = vmatprep.subr.mxu0 0.0
  %2246 = vmatpush1.msra.mxu0 0.0
  %2247 = vmatprep.subr.mxu0 0.0
  %2248 = vmatpush1.msra.mxu0 0.0
  %2249 = vmatprep.subr.mxu0 0.0
  %2250 = vmatpush1.msra.mxu0 0.0
  %2251 = vmatprep.subr.mxu0 0.0
  %2252 = vmatpush1.msra.mxu0 0.0
  %2253 = vmatprep.subr.mxu0 0.0
  %2254 = vmatpush1.msra.mxu0 0.0
  %2255 = vmatprep.subr.mxu0 0.0
  %2256 = vmatpush1.msra.mxu0 0.0
  %2257 = vmatprep.subr.mxu0 0.0
  %2258 = vmatpush1.msra.mxu0 0.0
  %2259 = vmatprep.subr.mxu0 0.0
  %2260 = vmatpush1.msra.mxu0 0.0
  %2261 = vmatprep.subr.mxu0 0.0
  %2262 = vmatpush1.msra.mxu0 0.0
  %2263 = vmatprep.subr.mxu0 0.0
  %2264 = vmatpush1.msra.mxu0 0.0
  %2265 = vmatprep.subr.mxu0 0.0
  %2266 = vmatpush1.msra.mxu0 0.0
  %2267 = vmatprep.subr.mxu0 0.0
  %2268 = vmatpush1.msra.mxu0 0.0
  %2269 = vmatprep.subr.mxu0 0.0
  %2270 = vmatpush1.msra.mxu0 0.0
  %2271 = vmatprep.subr.mxu0 0.0
  %2272 = vmatpush1.msra.mxu0 0.0
  %2273 = vmatprep.subr.mxu0 0.0
  %2274 = vmatpush1.msra.mxu0 0.0
  %2275 = vmatprep.subr.mxu0 0.0
  %2276 = vmatpush1.msra.mxu0 0.0
  %2277 = vmatprep.subr.mxu0 0.0
  %2278 = vmatpush1.msra.mxu0 0.0
  %2279 = vmatprep.subr.mxu0 0.0
  %2280 = vmatpush1.msra.mxu0 0.0
  %2281 = vmatprep.mubr.f32.mxu0 0.0
  %2282 = vmatmul.mubr.f32.gmra.mrb[0].mxu0 %v2215
  %v2283 = vpop.f32.mrb[0].mxu0
  %v2284 = vadd.f32 0.0, %v2283
  %v2285 = vpop.f32.mrb[0].mxu0
  %2286 = vdwg.mxu0
  %vm2287 = vcmask 519168
  %2288 = vst.msk [vmem:[%s15] sm:$0xf] %vm2287, %v2284
  // Predicated region
  $region50: #{_swav_forward.1} parent=0 // pred_check
    _
  $region51: #{_swav_forward.1} parent=0 // pred_check_branch
    %2290 = sbr.rel (0) target = $region53
  $region52: #{_swav_forward.1} parent=0 // pred_region
    _
  $region53: #{_swav_forward.1} parent=0 // pred_fallthru
    _
  // Predicated region
  $region54: #{_swav_forward.1} parent=0 // pred_check
    _
  $region55: #{_swav_forward.1} parent=0 // pred_check_branch
    %2292 = sbr.rel (0) target = $region57
  $region56: #{_swav_forward.1} parent=0 // pred_region
    _
  $region57: #{_swav_forward.1} parent=0 // pred_fallthru
    _
  // Predicated region
  $region58: #{_swav_forward.1} parent=0 // pred_check
    _
  $region59: #{_swav_forward.1} parent=0 // pred_check_branch
    %2294 = sbr.rel (0) target = $region61
  $region60: #{_swav_forward.1} parent=0 // pred_region
    _
  $region61: #{_swav_forward.1} parent=0 // pred_fallthru
    _
  // Predicated region
  $region62: #{_swav_forward.1} parent=0 // pred_check
    _
  $region63: #{_swav_forward.1} parent=0 // pred_check_branch
    %2296 = sbr.rel (0) target = $region65
  $region64: #{_swav_forward.1} parent=0 // pred_region
    _
  $region65: #{_swav_forward.1} parent=0 // pred_fallthru
    _
  // Predicated region
  $region66: #{_swav_forward.1} parent=0 // pred_check
    _
  $region67: #{_swav_forward.1} parent=0 // pred_check_branch
    %2298 = sbr.rel (0) target = $region69
  $region68: #{_swav_forward.1} parent=0 // pred_region
    _
  $region69: #{_swav_forward.1} parent=0 // pred_fallthru
    _
  // Predicated region
  $region70: #{_swav_forward.1} parent=0 // pred_check
    _
  $region71: #{_swav_forward.1} parent=0 // pred_check_branch
    %2300 = sbr.rel (0) target = $region73
  $region72: #{_swav_forward.1} parent=0 // pred_region
    _
  $region73: #{_swav_forward.1} parent=0 // pred_fallthru
    _
  // Predicated region
  $region74: #{_swav_forward.1} parent=0 // pred_check
    _
  $region75: #{_swav_forward.1} parent=0 // pred_check_branch
    %2302 = sbr.rel (0) target = $region77
  $region76: #{_swav_forward.1} parent=0 // pred_region
    _
  $region77: #{_swav_forward.1} parent=0 // pred_fallthru
    _
  // Predicated region
  $region78: #{_swav_forward.1} parent=0 // pred_check
    _
  $region79: #{_swav_forward.1} parent=0 // pred_check_branch
    %2304 = sbr.rel (0) target = $region81
  $region80: #{_swav_forward.1} parent=0 // pred_region
    _
  $region81: #{_swav_forward.1} parent=0 // pred_fallthru
    _

</llo_original>
